<compile_context>
chip_gen: v6e
topology: v6e:2x2x1
jax: 0.10.0
libtpu: 0.0.40
codegen_flags: <defaults>
</compile_context>

<pallas_src>
import numpy as np

import jax
import jax.numpy as jnp
from jax.experimental import pallas as pl
from jax.experimental.pallas import tpu as pltpu


# ---------------------------------------------------------------------------
# Fused kernel: per-frame single_shot net over a tile of frames, per-frame
# features accumulated in VMEM scratch across the grid, encoder + softmax
# applied on the last grid step.
# ---------------------------------------------------------------------------
def _detector_kernel(x_ref, wk_ref, cb_ref, pfc_ref, fb_ref, ew_ref, eb_ref,
                     o_ref, xpad_ref, feat_ref):
    tile_n, h, wc = x_ref.shape          # (tile_n, H, W*C), bf16
    won = wk_ref.shape[-1]               # W*OC (lane-dense conv activation)
    fpad = feat_ref.shape[-1]            # padded feature width (mult of 128)
    n_frames = feat_ref.shape[0]         # B * S
    b, _nc = o_ref.shape
    s = n_frames // b

    t = pl.program_id(0)

    # Zero the H-pad border rows of the frame slab once; they persist across
    # grid steps (only the interior rows are rewritten each step).
    @pl.when(t == 0)
    def _():
        xpad_ref[...] = jnp.zeros(xpad_ref.shape, xpad_ref.dtype)

    # Fold the zero-pad (H direction) into the kernel: copy the unpadded,
    # lane-dense frame tile into rows [1, 1+H) of the padded VMEM slab. The
    # W-direction pad is folded into the block-Toeplitz conv weights, so all
    # W*C lanes here carry live data.
    xpad_ref[:, 1:1 + h, :] = x_ref[...]

    # --- single_shot: conv3x3(pad=1) + bias + ReLU --------------------------
    # Three lane-dense bf16 MXU matmuls (one per kernel row kh):
    #   rows = (frame, y) = tile_n*H, K = W*C, N = W*OC, f32 accumulation.
    acc = jnp.zeros((tile_n * h, won), jnp.float32)
    for kh in range(3):
        slab = xpad_ref[:, kh:kh + h, :].reshape(tile_n * h, wc)
        acc = acc + jnp.dot(slab, wk_ref[kh],
                            preferred_element_type=jnp.float32)
    act = jnp.maximum(acc + cb_ref[...], 0.0)          # bias + ReLU, f32 VPU

    # --- global average pool + frame Linear(OC -> F) ------------------------
    # The x-direction pool is fused into the precomputed pool_fc weight
    # (pool_fc[x*OC+oc, f] = fc_w[oc, f] / W), so this is one bf16 matmul.
    row_feat = jnp.dot(act.astype(pfc_ref.dtype), pfc_ref[...],
                       preferred_element_type=jnp.float32)   # (tile_n*H, Fp)
    # The y-direction pool is a sublane-group mean.
    feat = jnp.mean(row_feat.reshape(tile_n, h, fpad), axis=1) + fb_ref[...]

    base = pl.multiple_of(t * tile_n, tile_n)
    feat_ref[pl.ds(base, tile_n), :] = feat            # lane-dense (Fp) store

    # --- encoder (temporal mean + Linear) + softmax on the last step --------
    @pl.when(t == pl.num_programs(0) - 1)
    def _():
        seq = jnp.mean(feat_ref[...].reshape(b, s, fpad), axis=1)   # (B, Fp)
        logits = jnp.dot(seq, ew_ref[...],
                         preferred_element_type=jnp.float32) + eb_ref[...]
        m = jnp.max(logits, axis=1, keepdims=True)
        e = jnp.exp(logits - m)
        o_ref[...] = e / jnp.sum(e, axis=1, keepdims=True)          # softmax dim=1


# ---------------------------------------------------------------------------
# Full DeepfakeDetector.forward
# ---------------------------------------------------------------------------
def deepfake_detector_forward(x, params, *, tile_n=8):
    """x: (B, S, C, H, W) float32 (PyTorch NCHW frames). Returns (B, NUM_CLASSES)."""
    B, S, C, H, W = x.shape
    N = B * S
    tile_n = min(tile_n, N)
    assert N % tile_n == 0, "B*S must be divisible by tile_n"

    OC = params["conv_w"].shape[-1]
    F = params["fc_w"].shape[-1]
    NC = params["enc_w"].shape[-1]
    F_pad = ((F + 127) // 128) * 128
    WC = W * C
    WO = W * OC

    # Guard the VMEM-resident (N, F_pad) feature scratch.
    assert N * F_pad * 4 <= 4 * 1024 * 1024, \
        "feature scratch too large for VMEM; spill to HBM for long sequences"

    # x.view(-1, C, H, W); NCHW -> lane-dense (N, H, W*C) bf16. No jnp.pad:
    # padding is folded into the kernel / the block-Toeplitz weights.
    x_ld = jnp.transpose(x.reshape(N, C, H, W), (0, 2, 3, 1)).reshape(N, H, WC)
    x_ld = x_ld.astype(jnp.bfloat16)

    # Block-Toeplitz conv weights, one (W*C, W*OC) matrix per kernel row kh,
    # with the W-direction zero pad folded in:
    #   Wk[kh, xi*C + c, xo*OC + oc] = conv_w[kh, xi - xo + 1, c, oc]
    # (zero when xi - xo + 1 is outside [0, 3)).
    sel = np.zeros((3, W, W), np.float32)
    for kw in range(3):
        xo = np.arange(W)
        xi = xo + kw - 1
        m = (xi >= 0) & (xi < W)
        sel[kw, xi[m], xo[m]] = 1.0
    wk = jnp.einsum("kio,hkcd->hicod", jnp.asarray(sel),
                    params["conv_w"]).reshape(3, WC, WO).astype(jnp.bfloat16)

    bias_row = jnp.tile(params["conv_b"].reshape(1, OC), (1, W))       # (1, W*OC) f32
    pool_fc = jnp.pad(jnp.tile(params["fc_w"], (W, 1)) / W,
                      ((0, 0), (0, F_pad - F))).astype(jnp.bfloat16)   # (W*OC, Fp)
    fc_b_row = jnp.pad(params["fc_b"].reshape(1, F),
                       ((0, 0), (0, F_pad - F)))                        # (1, Fp) f32
    enc_w = jnp.pad(params["enc_w"], ((0, F_pad - F), (0, 0)))          # (Fp, NC) f32
    enc_b = params["enc_b"].reshape(1, NC)

    num_tiles = N // tile_n

    flops = (2 * N * H * (3 * WC) * WO        # conv matmuls
             + 2 * N * H * WO * F_pad         # pool + frame linear matmul
             + 2 * B * F_pad * NC)            # encoder linear
    bytes_accessed = (2 * x_ld.size                        # bf16 frames
                      + 2 * (wk.size + pool_fc.size)       # bf16 weights
                      + 4 * (bias_row.size + fc_b_row.size + enc_w.size
                             + enc_b.size + B * NC))

    return pl.pallas_call(
        _detector_kernel,
        out_shape=jax.ShapeDtypeStruct((B, NC), jnp.float32),
        grid=(num_tiles,),
        in_specs=[
            pl.BlockSpec((tile_n, H, WC), lambda t: (t, 0, 0)),
            # Constant-index weight blocks: DMA'd once, revisited every step.
            pl.BlockSpec((3, WC, WO), lambda t: (0, 0, 0)),
            pl.BlockSpec((1, WO), lambda t: (0, 0)),
            pl.BlockSpec((WO, F_pad), lambda t: (0, 0)),
            pl.BlockSpec((1, F_pad), lambda t: (0, 0)),
            pl.BlockSpec((F_pad, NC), lambda t: (0, 0)),
            pl.BlockSpec((1, NC), lambda t: (0, 0)),
        ],
        out_specs=pl.BlockSpec((B, NC), lambda t: (0, 0)),
        scratch_shapes=[
            pltpu.VMEM((tile_n, H + 2, WC), jnp.bfloat16),   # H-padded frame slab
            pltpu.VMEM((N, F_pad), jnp.float32),             # per-frame features
        ],
        compiler_params=pltpu.CompilerParams(
            # "arbitrary": the feature scratch + fused encoder carry state
            # across the frame-tile axis (output written only on last step).
            dimension_semantics=("arbitrary",),
            vmem_limit_bytes=32 * 1024 * 1024,
        ),
        cost_estimate=pl.CostEstimate(
            flops=flops, transcendentals=B * NC, bytes_accessed=bytes_accessed),
    )(x_ld, wk, bias_row, pool_fc, fc_b_row, enc_w, enc_b)


# ---------------------------------------------------------------------------
# Pure-JAX reference for correctness checking
# ---------------------------------------------------------------------------
def _reference_forward(x, params):
    B, S, C, H, W = x.shape
    N = B * S
    OC = params["conv_w"].shape[-1]
    xf = jnp.transpose(x.reshape(N, C, H, W), (0, 2, 3, 1))
    xp = jnp.pad(xf, ((0, 0), (1, 1), (1, 1), (0, 0)))
    conv = jnp.zeros((N, H, W, OC), jnp.float32)
    for kh in range(3):
        for kw in range(3):
            conv = conv + jnp.einsum("nhwc,co->nhwo",
                                     xp[:, kh:kh + H, kw:kw + W, :],
                                     params["conv_w"][kh, kw])
    conv = jnp.maximum(conv + params["conv_b"].reshape(1, 1, 1, OC), 0.0)
    pooled = conv.mean(axis=(1, 2))                            # (N, OC)
    feat = pooled @ params["fc_w"] + params["fc_b"]            # (N, F)
    seq = feat.reshape(B, S, -1).mean(axis=1)                  # (B, F)
    logits = seq @ params["enc_w"] + params["enc_b"]           # (B, NC)
    return jax.nn.softmax(logits, axis=1)


if __name__ == "__main__":
    B, S, C, H, W = 2, 8, 4, 16, 16
    OC, F, NUM_CLASSES = 8, 32, 2

    key = jax.random.PRNGKey(0)
    k_x, k_cw, k_cb, k_fw, k_fb, k_ew, k_eb = jax.random.split(key, 7)

    x = jax.random.normal(k_x, (B, S, C, H, W), jnp.float32)
    params = {
        "conv_w": 0.1 * jax.random.normal(k_cw, (3, 3, C, OC), jnp.float32),
        "conv_b": 0.1 * jax.random.normal(k_cb, (1, OC), jnp.float32),
        "fc_w":   0.1 * jax.random.normal(k_fw, (OC, F), jnp.float32),
        "fc_b":   0.1 * jax.random.normal(k_fb, (1, F), jnp.float32),
        "enc_w":  0.1 * jax.random.normal(k_ew, (F, NUM_CLASSES), jnp.float32),
        "enc_b":  0.1 * jax.random.normal(k_eb, (1, NUM_CLASSES), jnp.float32),
    }

    probs = jax.jit(deepfake_detector_forward)(x, params)
    probs = jax.block_until_ready(probs)

    ref = _reference_forward(x, params)

    assert probs.shape == (B, NUM_CLASSES)
    assert bool(jnp.all(jnp.isfinite(probs)))
    assert bool(jnp.allclose(jnp.sum(probs, axis=1), 1.0, atol=1e-5))
    assert bool(jnp.allclose(probs, ref, atol=1e-2)), "mismatch vs pure-JAX reference"
    print("KERNEL_OK")
</pallas_src>

<mosaic_0001>
module attributes {stable_mosaic.version = 11 : i64} {
  func.func @_detector_kernel(%arg0: i32, %arg1: memref<8x16x64xbf16, #tpu.memory_space<vmem>>, %arg2: memref<3x64x128xbf16, #tpu.memory_space<vmem>>, %arg3: memref<1x128xf32, #tpu.memory_space<vmem>>, %arg4: memref<128x128xbf16, #tpu.memory_space<vmem>>, %arg5: memref<1x128xf32, #tpu.memory_space<vmem>>, %arg6: memref<128x2xf32, #tpu.memory_space<vmem>>, %arg7: memref<1x2xf32, #tpu.memory_space<vmem>>, %arg8: memref<2x2xf32, #tpu.memory_space<vmem>>, %arg9: memref<8x18x64xbf16, #tpu.memory_space<vmem>>, %arg10: memref<16x128xf32, #tpu.memory_space<vmem>>) attributes {dimension_semantics = [#tpu.dimension_semantics<arbitrary>], iteration_bounds = array<i64: 2>, scalar_prefetch = 0 : i64, scratch_operands = 2 : i64, tpu.core_type = #tpu.core_type<tc>, window_params = [{transform_indices = @transform_0, window_bounds = array<i64: 8, 16, 64>}, {pipeline_mode = #tpu.pipeline_mode<synchronous>, transform_indices = @transform_1, window_bounds = array<i64: 3, 64, 128>}, {pipeline_mode = #tpu.pipeline_mode<synchronous>, transform_indices = @transform_2, window_bounds = array<i64: 1, 128>}, {pipeline_mode = #tpu.pipeline_mode<synchronous>, transform_indices = @transform_3, window_bounds = array<i64: 128, 128>}, {pipeline_mode = #tpu.pipeline_mode<synchronous>, transform_indices = @transform_4, window_bounds = array<i64: 1, 128>}, {pipeline_mode = #tpu.pipeline_mode<synchronous>, transform_indices = @transform_5, window_bounds = array<i64: 128, 2>}, {pipeline_mode = #tpu.pipeline_mode<synchronous>, transform_indices = @transform_6, window_bounds = array<i64: 1, 2>}, {pipeline_mode = #tpu.pipeline_mode<synchronous>, transform_indices = @transform_7, window_bounds = array<i64: 2, 2>}]} {
    %c0_i32 = arith.constant 0 : i32
    %0 = arith.cmpi eq, %arg0, %c0_i32 : i32
    %1 = arith.extui %0 : i1 to i32
    %c0_i32_0 = arith.constant 0 : i32
    %2 = arith.cmpi ne, %1, %c0_i32_0 : i32
    scf.if %2 {
      %cst_37 = arith.constant 0.000000e+00 : bf16
      %46 = vector.broadcast %cst_37 : bf16 to vector<8x18x64xbf16>
      %c0_38 = arith.constant 0 : index
      %c0_39 = arith.constant 0 : index
      %c0_40 = arith.constant 0 : index
      %47 = vector.load %arg9[%c0_38, %c0_39, %c0_40] : memref<8x18x64xbf16, #tpu.memory_space<vmem>>, vector<8x18x64xbf16>
      tpu.vector_store %arg9[%c0_38, %c0_39, %c0_40], %46 {strides = array<i32>} : memref<8x18x64xbf16, #tpu.memory_space<vmem>>, vector<8x18x64xbf16>,
    } else {
    }
    %c0 = arith.constant 0 : index
    %c0_1 = arith.constant 0 : index
    %c0_2 = arith.constant 0 : index
    %3 = vector.load %arg1[%c0, %c0_1, %c0_2] : memref<8x16x64xbf16, #tpu.memory_space<vmem>>, vector<8x16x64xbf16>
    %c0_3 = arith.constant 0 : index
    %c1 = arith.constant 1 : index
    %c0_4 = arith.constant 0 : index
    %4 = vector.load %arg9[%c0_3, %c1, %c0_4] : memref<8x18x64xbf16, #tpu.memory_space<vmem>>, vector<8x16x64xbf16>
    tpu.vector_store %arg9[%c0_3, %c1, %c0_4], %3 {strides = array<i32>} : memref<8x18x64xbf16, #tpu.memory_space<vmem>>, vector<8x16x64xbf16>,
    %cst = arith.constant 0.000000e+00 : f32
    %5 = vector.broadcast %cst : f32 to vector<128x128xf32>
    %c0_5 = arith.constant 0 : index
    %c0_6 = arith.constant 0 : index
    %c0_7 = arith.constant 0 : index
    %6 = vector.load %arg9[%c0_5, %c0_6, %c0_7] : memref<8x18x64xbf16, #tpu.memory_space<vmem>>, vector<8x16x64xbf16>
    %7 = vector.shape_cast %6 : vector<8x16x64xbf16> to vector<128x64xbf16>
    %c0_8 = arith.constant 0 : index
    %c0_9 = arith.constant 0 : index
    %c0_10 = arith.constant 0 : index
    %8 = vector.load %arg2[%c0_8, %c0_9, %c0_10] : memref<3x64x128xbf16, #tpu.memory_space<vmem>>, vector<1x64x128xbf16>
    %9 = vector.shape_cast %8 : vector<1x64x128xbf16> to vector<64x128xbf16>
    %cst_11 = arith.constant dense<0.000000e+00> : vector<128x128xf32>
    %10 = tpu.matmul %7, %9, %cst_11 {dimension_numbers = #tpu.dot_dimension_numbers<[1], [0], [0], [1], [0, 0, 1, 1], [], []>} : vector<128x64xbf16>, vector<64x128xbf16>, vector<128x128xf32> -> vector<128x128xf32>
    %11 = arith.addf %5, %10 : vector<128x128xf32>
    %c0_12 = arith.constant 0 : index
    %c1_13 = arith.constant 1 : index
    %c0_14 = arith.constant 0 : index
    %12 = vector.load %arg9[%c0_12, %c1_13, %c0_14] : memref<8x18x64xbf16, #tpu.memory_space<vmem>>, vector<8x16x64xbf16>
    %13 = vector.shape_cast %12 : vector<8x16x64xbf16> to vector<128x64xbf16>
    %c1_15 = arith.constant 1 : index
    %c0_16 = arith.constant 0 : index
    %c0_17 = arith.constant 0 : index
    %14 = vector.load %arg2[%c1_15, %c0_16, %c0_17] : memref<3x64x128xbf16, #tpu.memory_space<vmem>>, vector<1x64x128xbf16>
    %15 = vector.shape_cast %14 : vector<1x64x128xbf16> to vector<64x128xbf16>
    %cst_18 = arith.constant dense<0.000000e+00> : vector<128x128xf32>
    %16 = tpu.matmul %13, %15, %cst_18 {dimension_numbers = #tpu.dot_dimension_numbers<[1], [0], [0], [1], [0, 0, 1, 1], [], []>} : vector<128x64xbf16>, vector<64x128xbf16>, vector<128x128xf32> -> vector<128x128xf32>
    %17 = arith.addf %11, %16 : vector<128x128xf32>
    %c0_19 = arith.constant 0 : index
    %c2 = arith.constant 2 : index
    %c0_20 = arith.constant 0 : index
    %18 = vector.load %arg9[%c0_19, %c2, %c0_20] : memref<8x18x64xbf16, #tpu.memory_space<vmem>>, vector<8x16x64xbf16>
    %19 = vector.shape_cast %18 : vector<8x16x64xbf16> to vector<128x64xbf16>
    %c2_21 = arith.constant 2 : index
    %c0_22 = arith.constant 0 : index
    %c0_23 = arith.constant 0 : index
    %20 = vector.load %arg2[%c2_21, %c0_22, %c0_23] : memref<3x64x128xbf16, #tpu.memory_space<vmem>>, vector<1x64x128xbf16>
    %21 = vector.shape_cast %20 : vector<1x64x128xbf16> to vector<64x128xbf16>
    %cst_24 = arith.constant dense<0.000000e+00> : vector<128x128xf32>
    %22 = tpu.matmul %19, %21, %cst_24 {dimension_numbers = #tpu.dot_dimension_numbers<[1], [0], [0], [1], [0, 0, 1, 1], [], []>} : vector<128x64xbf16>, vector<64x128xbf16>, vector<128x128xf32> -> vector<128x128xf32>
    %23 = arith.addf %17, %22 : vector<128x128xf32>
    %c0_25 = arith.constant 0 : index
    %c0_26 = arith.constant 0 : index
    %24 = vector.load %arg3[%c0_25, %c0_26] : memref<1x128xf32, #tpu.memory_space<vmem>>, vector<1x128xf32>
    %25 = vector.broadcast %24 : vector<1x128xf32> to vector<128x128xf32>
    %26 = arith.addf %23, %25 : vector<128x128xf32>
    %cst_27 = arith.constant 0.000000e+00 : f32
    %27 = vector.broadcast %cst_27 : f32 to vector<128x128xf32>
    %28 = arith.maximumf %26, %27 : vector<128x128xf32>
    %29 = arith.truncf %28 : vector<128x128xf32> to vector<128x128xbf16>
    %c0_28 = arith.constant 0 : index
    %c0_29 = arith.constant 0 : index
    %30 = vector.load %arg4[%c0_28, %c0_29] : memref<128x128xbf16, #tpu.memory_space<vmem>>, vector<128x128xbf16>
    %cst_30 = arith.constant dense<0.000000e+00> : vector<128x128xf32>
    %31 = tpu.matmul %29, %30, %cst_30 {dimension_numbers = #tpu.dot_dimension_numbers<[1], [0], [0], [1], [0, 0, 1, 1], [], []>} : vector<128x128xbf16>, vector<128x128xbf16>, vector<128x128xf32> -> vector<128x128xf32>
    %32 = vector.shape_cast %31 : vector<128x128xf32> to vector<8x16x128xf32>
    %cst_31 = arith.constant dense<0.000000e+00> : vector<8x128xf32>
    %33 = vector.multi_reduction <add>, %32, %cst_31 [1] : vector<8x16x128xf32> to vector<8x128xf32>
    %cst_32 = arith.constant 1.600000e+01 : f32
    %34 = vector.broadcast %cst_32 : f32 to vector<8x128xf32>
    %35 = arith.divf %33, %34 : vector<8x128xf32>
    %c0_33 = arith.constant 0 : index
    %c0_34 = arith.constant 0 : index
    %36 = vector.load %arg5[%c0_33, %c0_34] : memref<1x128xf32, #tpu.memory_space<vmem>>, vector<1x128xf32>
    %37 = vector.broadcast %36 : vector<1x128xf32> to vector<8x128xf32>
    %38 = arith.addf %35, %37 : vector<8x128xf32>
    %c8_i32 = arith.constant 8 : i32
    %39 = arith.muli %arg0, %c8_i32 : i32
    %40 = tpu.assume_multiple %39, 8 : i32
    %41 = arith.index_cast %40 : i32 to index
    %c0_35 = arith.constant 0 : index
    %42 = vector.load %arg10[%41, %c0_35] : memref<16x128xf32, #tpu.memory_space<vmem>>, vector<8x128xf32>
    tpu.vector_store %arg10[%41, %c0_35], %38 {strides = array<i32>} : memref<16x128xf32, #tpu.memory_space<vmem>>, vector<8x128xf32>,
    %c1_i32 = arith.constant 1 : i32
    %43 = arith.cmpi eq, %arg0, %c1_i32 : i32
    %44 = arith.extui %43 : i1 to i32
    %c0_i32_36 = arith.constant 0 : i32
    %45 = arith.cmpi ne, %44, %c0_i32_36 : i32
    scf.if %45 {
      %c0_37 = arith.constant 0 : index
      %c0_38 = arith.constant 0 : index
      %46 = vector.load %arg10[%c0_37, %c0_38] : memref<16x128xf32, #tpu.memory_space<vmem>>, vector<16x128xf32>
      %47 = vector.shape_cast %46 : vector<16x128xf32> to vector<2x8x128xf32>
      %cst_39 = arith.constant dense<0.000000e+00> : vector<2x128xf32>
      %48 = vector.multi_reduction <add>, %47, %cst_39 [1] : vector<2x8x128xf32> to vector<2x128xf32>
      %cst_40 = arith.constant 8.000000e+00 : f32
      %49 = vector.broadcast %cst_40 : f32 to vector<2x128xf32>
      %50 = arith.divf %48, %49 : vector<2x128xf32>
      %c0_41 = arith.constant 0 : index
      %c0_42 = arith.constant 0 : index
      %51 = vector.load %arg6[%c0_41, %c0_42] : memref<128x2xf32, #tpu.memory_space<vmem>>, vector<128x2xf32>
      %cst_43 = arith.constant dense<0.000000e+00> : vector<2x2xf32>
      %52 = tpu.matmul %50, %51, %cst_43 {dimension_numbers = #tpu.dot_dimension_numbers<[1], [0], [0], [1], [0, 0, 1, 1], [], []>} : vector<2x128xf32>, vector<128x2xf32>, vector<2x2xf32> -> vector<2x2xf32>
      %c0_44 = arith.constant 0 : index
      %c0_45 = arith.constant 0 : index
      %53 = vector.load %arg7[%c0_44, %c0_45] : memref<1x2xf32, #tpu.memory_space<vmem>>, vector<1x2xf32>
      %54 = vector.broadcast %53 : vector<1x2xf32> to vector<2x2xf32>
      %55 = arith.addf %52, %54 : vector<2x2xf32>
      %cst_46 = arith.constant dense<0xFF800000> : vector<2xf32>
      %56 = vector.multi_reduction <maximumf>, %55, %cst_46 [1] : vector<2x2xf32> to vector<2xf32>
      %57 = vector.shape_cast %56 : vector<2xf32> to vector<2x1xf32>
      %58 = vector.broadcast %57 : vector<2x1xf32> to vector<2x2xf32>
      %59 = arith.subf %55, %58 : vector<2x2xf32>
      %60 = math.exp %59 : vector<2x2xf32>
      %cst_47 = arith.constant dense<0.000000e+00> : vector<2xf32>
      %61 = vector.multi_reduction <add>, %60, %cst_47 [1] : vector<2x2xf32> to vector<2xf32>
      %62 = vector.shape_cast %61 : vector<2xf32> to vector<2x1xf32>
      %63 = vector.broadcast %62 : vector<2x1xf32> to vector<2x2xf32>
      %64 = arith.divf %60, %63 : vector<2x2xf32>
      %c0_48 = arith.constant 0 : index
      %c0_49 = arith.constant 0 : index
      %65 = vector.load %arg8[%c0_48, %c0_49] : memref<2x2xf32, #tpu.memory_space<vmem>>, vector<2x2xf32>
      tpu.vector_store %arg8[%c0_48, %c0_49], %64 {strides = array<i32>} : memref<2x2xf32, #tpu.memory_space<vmem>>, vector<2x2xf32>,
    } else {
    }
    return
  }
  func.func @transform_0(%arg0: i32) -> (i32, i32, i32) {
    %c0_i32 = arith.constant 0 : i32
    %c0_i32_0 = arith.constant 0 : i32
    %c0_i32_1 = arith.constant 0 : i32
    return %arg0, %c0_i32, %c0_i32_0 : i32, i32, i32
  }
  func.func @transform_1(%arg0: i32) -> (i32, i32, i32) {
    %c0_i32 = arith.constant 0 : i32
    %c0_i32_0 = arith.constant 0 : i32
    %c0_i32_1 = arith.constant 0 : i32
    %c0_i32_2 = arith.constant 0 : i32
    return %c0_i32, %c0_i32_0, %c0_i32_1 : i32, i32, i32
  }
  func.func @transform_2(%arg0: i32) -> (i32, i32) {
    %c0_i32 = arith.constant 0 : i32
    %c0_i32_0 = arith.constant 0 : i32
    %c0_i32_1 = arith.constant 0 : i32
    return %c0_i32, %c0_i32_0 : i32, i32
  }
  func.func @transform_3(%arg0: i32) -> (i32, i32) {
    %c0_i32 = arith.constant 0 : i32
    %c0_i32_0 = arith.constant 0 : i32
    %c0_i32_1 = arith.constant 0 : i32
    return %c0_i32, %c0_i32_0 : i32, i32
  }
  func.func @transform_4(%arg0: i32) -> (i32, i32) {
    %c0_i32 = arith.constant 0 : i32
    %c0_i32_0 = arith.constant 0 : i32
    %c0_i32_1 = arith.constant 0 : i32
    return %c0_i32, %c0_i32_0 : i32, i32
  }
  func.func @transform_5(%arg0: i32) -> (i32, i32) {
    %c0_i32 = arith.constant 0 : i32
    %c0_i32_0 = arith.constant 0 : i32
    %c0_i32_1 = arith.constant 0 : i32
    return %c0_i32, %c0_i32_0 : i32, i32
  }
  func.func @transform_6(%arg0: i32) -> (i32, i32) {
    %c0_i32 = arith.constant 0 : i32
    %c0_i32_0 = arith.constant 0 : i32
    %c0_i32_1 = arith.constant 0 : i32
    return %c0_i32, %c0_i32_0 : i32, i32
  }
  func.func @transform_7(%arg0: i32) -> (i32, i32) {
    %c0_i32 = arith.constant 0 : i32
    %c0_i32_0 = arith.constant 0 : i32
    %c0_i32_1 = arith.constant 0 : i32
    return %c0_i32, %c0_i32_0 : i32, i32
  }
}

</mosaic_0001>

<llo_original>
// kernel: deepfake_detector_forward.1
$region0: #{deepfake_detector_forward.1}
  #allocation0 [shape = 'u32[]', space=smem, size = 0x4, offset = 0x4, fixed_abs, tag = 'smem constant byte address 0x4 - core index']
  #allocation1 [shape = 'u32[144,128]{1,0:T(1,128)}', space=vmem, size = 0x12000, scoped, tag = 'internal scratch']
  #allocation2 [shape = 'bf16[8,18,64]{2,1,0:T(8,128)(2,1)}', space=vmem, size = 0xc000, scoped, tag = 'scratch operand']
  #allocation3 [shape = 'f32[16,128]{1,0:T(8,128)}', space=vmem, size = 0x2000, scoped, tag = 'scratch operand']
  %s0 = inlined_call_operand.vmem [shape: bf16[16,16,64], index: 0, kind: input, shape index: {}]
  %s1 = inlined_call_operand.vmem [shape: bf16[3,64,128], index: 1, kind: input, shape index: {}]
  %s2 = inlined_call_operand.vmem [shape: f32[1,128], index: 2, kind: input, shape index: {}]
  %s3 = inlined_call_operand.vmem [shape: bf16[128,128], index: 3, kind: input, shape index: {}]
  %s4 = inlined_call_operand.vmem [shape: f32[1,128], index: 4, kind: input, shape index: {}]
  %s5 = inlined_call_operand.vmem [shape: f32[128,2], index: 5, kind: input, shape index: {}]
  %s6 = inlined_call_operand.vmem [shape: f32[1,2], index: 6, kind: input, shape index: {}]
  %s7 = inlined_call_operand.hbm [shape: f32[2,2], index: 7, kind: output, shape index: {}]
  %s8 = sld [smem:[#allocation0]]
  $region69: #{deepfake_detector_forward.1} parent=0
    _
  %s10 = ssub.s32 1, %s8
  %s11 = scalar_select 0, %s10, %s8
  $region1: #{deepfake_detector_forward.1} parent=0
    #allocation4 [shape = 'u8[1024]{0}', space=vmem, size = 0x400, scoped, tag = 'output window, operand 0, single buffered']
    #allocation5 [shape = 's32[2]{0}', space=sflag, size = 0x8, scoped, tag = 'scoped memory for deepfake_detector_forward.1']
    %12 = vsyncpa [#allocation5], 0
    loop: start=0, step=1, limit=4
    $region2: #{deepfake_detector_forward.1} parent=1 // loop_pre_header
      _
    $region3: #{deepfake_detector_forward.1} parent=1 // loop_header
      %s14 = sphi 0, %s18
      %p15 = scmp.ge.s32.totalorder %s14, 4
      %s24 = sphi 0, %s26
      %s27 = sphi 0, %s24
      %s28 = sphi 0, %s27
      %s44 = sphi 0, %s28
      %s48 = sphi 0, %s48
      %s50 = sphi 0, %s48
      %s51 = sphi 0, %s50
      %s65 = sphi 0, %s51
      %s69 = sphi 0, %s69
      %s71 = sphi 0, %s69
      %s72 = sphi 0, %s71
      %s86 = sphi 0, %s72
      %s90 = sphi 0, %s90
      %s92 = sphi 0, %s90
      %s93 = sphi 0, %s92
      %s107 = sphi 0, %s93
      %s111 = sphi 0, %s111
      %s113 = sphi 0, %s111
      %s114 = sphi 0, %s113
      %s128 = sphi 0, %s114
      %s132 = sphi 0, %s132
      %s134 = sphi 0, %s132
      %s135 = sphi 0, %s134
      %s149 = sphi 0, %s135
      %s153 = sphi 0, %s153
      %s155 = sphi 0, %s153
      %s156 = sphi 0, %s155
      %s170 = sphi 0, %s156
      %s174 = sphi 0, %s174
      %s176 = sphi 0, %s174
      %s177 = sphi 0, %s176
      %s191 = sphi 0, %s177
    $region4: #{deepfake_detector_forward.1} parent=1 // loop_header_branch
      %17 = sbr.rel (%p15) target = $region8
    $region5: #{deepfake_detector_forward.1} parent=1 // loop_body
      %s19 = ssub.s32 %s14, 1
      %s20 = ssub.s32 %s14, 2
      %s21 = sadd.s32 %s14, 1
      %s22 = ssub.s32 %s14, %s21
      %p23 = scmp.eq.s32.totalorder %s22, 0
      %s25 = sadd.s32 %s24, 1
      %s26 = scalar_select %p23, %s24, %s25
      %p29 = pneg %p23
      %p30 = scmp.eq.s32.totalorder %s14, 1
      %p31 = por %p29, %p30
      %p32 = scmp.ne.s32.totalorder %s24, %s27
      %p33 = scmp.eq.s32.totalorder %s14, 0
      %p34 = por %p32, %p33
      %p35 = scmp.ne.s32.totalorder %s24, %s27
      %p36 = scmp.eq.s32.totalorder %s19, 1
      %p37 = por %p35, %p36
      %p38 = scmp.ne.s32.totalorder %s27, %s28
      %p39 = scmp.eq.s32.totalorder %s19, 0
      %p40 = por %p38, %p39
      %p41 = scmp.ne.s32.totalorder %s27, %s28
      %p42 = scmp.eq.s32.totalorder %s20, 1
      %p43 = por %p41, %p42
      %p45 = scmp.ne.s32.totalorder %s28, %s44
      %p46 = scmp.eq.s32.totalorder %s20, 0
      %p47 = por %p45, %p46
      %s49 = sadd.s32 %s48, 1
      %p52 = scmp.eq.s32.totalorder %s14, 1
      %p53 = scmp.ne.s32.totalorder %s48, %s50
      %p54 = scmp.eq.s32.totalorder %s14, 0
      %p55 = por %p53, %p54
      %p56 = scmp.ne.s32.totalorder %s48, %s50
      %p57 = scmp.eq.s32.totalorder %s19, 1
      %p58 = por %p56, %p57
      %p59 = scmp.ne.s32.totalorder %s50, %s51
      %p60 = scmp.eq.s32.totalorder %s19, 0
      %p61 = por %p59, %p60
      %p62 = scmp.ne.s32.totalorder %s50, %s51
      %p63 = scmp.eq.s32.totalorder %s20, 1
      %p64 = por %p62, %p63
      %p66 = scmp.ne.s32.totalorder %s51, %s65
      %p67 = scmp.eq.s32.totalorder %s20, 0
      %p68 = por %p66, %p67
      %s70 = sadd.s32 %s69, 1
      %p73 = scmp.eq.s32.totalorder %s14, 1
      %p74 = scmp.ne.s32.totalorder %s69, %s71
      %p75 = scmp.eq.s32.totalorder %s14, 0
      %p76 = por %p74, %p75
      %p77 = scmp.ne.s32.totalorder %s69, %s71
      %p78 = scmp.eq.s32.totalorder %s19, 1
      %p79 = por %p77, %p78
      %p80 = scmp.ne.s32.totalorder %s71, %s72
      %p81 = scmp.eq.s32.totalorder %s19, 0
      %p82 = por %p80, %p81
      %p83 = scmp.ne.s32.totalorder %s71, %s72
      %p84 = scmp.eq.s32.totalorder %s20, 1
      %p85 = por %p83, %p84
      %p87 = scmp.ne.s32.totalorder %s72, %s86
      %p88 = scmp.eq.s32.totalorder %s20, 0
      %p89 = por %p87, %p88
      %s91 = sadd.s32 %s90, 1
      %p94 = scmp.eq.s32.totalorder %s14, 1
      %p95 = scmp.ne.s32.totalorder %s90, %s92
      %p96 = scmp.eq.s32.totalorder %s14, 0
      %p97 = por %p95, %p96
      %p98 = scmp.ne.s32.totalorder %s90, %s92
      %p99 = scmp.eq.s32.totalorder %s19, 1
      %p100 = por %p98, %p99
      %p101 = scmp.ne.s32.totalorder %s92, %s93
      %p102 = scmp.eq.s32.totalorder %s19, 0
      %p103 = por %p101, %p102
      %p104 = scmp.ne.s32.totalorder %s92, %s93
      %p105 = scmp.eq.s32.totalorder %s20, 1
      %p106 = por %p104, %p105
      %p108 = scmp.ne.s32.totalorder %s93, %s107
      %p109 = scmp.eq.s32.totalorder %s20, 0
      %p110 = por %p108, %p109
      %s112 = sadd.s32 %s111, 1
      %p115 = scmp.eq.s32.totalorder %s14, 1
      %p116 = scmp.ne.s32.totalorder %s111, %s113
      %p117 = scmp.eq.s32.totalorder %s14, 0
      %p118 = por %p116, %p117
      %p119 = scmp.ne.s32.totalorder %s111, %s113
      %p120 = scmp.eq.s32.totalorder %s19, 1
      %p121 = por %p119, %p120
      %p122 = scmp.ne.s32.totalorder %s113, %s114
      %p123 = scmp.eq.s32.totalorder %s19, 0
      %p124 = por %p122, %p123
      %p125 = scmp.ne.s32.totalorder %s113, %s114
      %p126 = scmp.eq.s32.totalorder %s20, 1
      %p127 = por %p125, %p126
      %p129 = scmp.ne.s32.totalorder %s114, %s128
      %p130 = scmp.eq.s32.totalorder %s20, 0
      %p131 = por %p129, %p130
      %s133 = sadd.s32 %s132, 1
      %p136 = scmp.eq.s32.totalorder %s14, 1
      %p137 = scmp.ne.s32.totalorder %s132, %s134
      %p138 = scmp.eq.s32.totalorder %s14, 0
      %p139 = por %p137, %p138
      %p140 = scmp.ne.s32.totalorder %s132, %s134
      %p141 = scmp.eq.s32.totalorder %s19, 1
      %p142 = por %p140, %p141
      %p143 = scmp.ne.s32.totalorder %s134, %s135
      %p144 = scmp.eq.s32.totalorder %s19, 0
      %p145 = por %p143, %p144
      %p146 = scmp.ne.s32.totalorder %s134, %s135
      %p147 = scmp.eq.s32.totalorder %s20, 1
      %p148 = por %p146, %p147
      %p150 = scmp.ne.s32.totalorder %s135, %s149
      %p151 = scmp.eq.s32.totalorder %s20, 0
      %p152 = por %p150, %p151
      %s154 = sadd.s32 %s153, 1
      %p157 = scmp.eq.s32.totalorder %s14, 1
      %p158 = scmp.ne.s32.totalorder %s153, %s155
      %p159 = scmp.eq.s32.totalorder %s14, 0
      %p160 = por %p158, %p159
      %p161 = scmp.ne.s32.totalorder %s153, %s155
      %p162 = scmp.eq.s32.totalorder %s19, 1
      %p163 = por %p161, %p162
      %p164 = scmp.ne.s32.totalorder %s155, %s156
      %p165 = scmp.eq.s32.totalorder %s19, 0
      %p166 = por %p164, %p165
      %p167 = scmp.ne.s32.totalorder %s155, %s156
      %p168 = scmp.eq.s32.totalorder %s20, 1
      %p169 = por %p167, %p168
      %p171 = scmp.ne.s32.totalorder %s156, %s170
      %p172 = scmp.eq.s32.totalorder %s20, 0
      %p173 = por %p171, %p172
      %s175 = sadd.s32 %s174, 1
      %p178 = scmp.eq.s32.totalorder %s14, 1
      %p179 = scmp.ne.s32.totalorder %s174, %s176
      %p180 = scmp.eq.s32.totalorder %s14, 0
      %p181 = por %p179, %p180
      %p182 = scmp.ne.s32.totalorder %s174, %s176
      %p183 = scmp.eq.s32.totalorder %s19, 1
      %p184 = por %p182, %p183
      %p185 = scmp.ne.s32.totalorder %s176, %s177
      %p186 = scmp.eq.s32.totalorder %s19, 0
      %p187 = por %p185, %p186
      %p188 = scmp.ne.s32.totalorder %s176, %s177
      %p189 = scmp.eq.s32.totalorder %s20, 1
      %p190 = por %p188, %p189
      %p192 = scmp.ne.s32.totalorder %s177, %s191
      %p193 = scmp.eq.s32.totalorder %s20, 0
      %p194 = por %p192, %p193
      %p195 = scmp.le.s32.totalorder 1, %s14
      %p196 = scmp.lt.s32.totalorder %s14, 3
      %p197 = pnand %p195, %p196
      %p198 = pneg %p197
      // Predicated region
      $region9: #{deepfake_detector_forward.1} parent=5 // pred_check
        _
      $region10: #{deepfake_detector_forward.1} parent=5 // pred_check_branch
        %200 = sbr.rel (%p197) target = $region12
      $region11: #{deepfake_detector_forward.1} parent=5 // pred_region
        %s201 = ssub.s32 %s14, 1
        // Predicated region
        $region13: #{deepfake_detector_forward.1} parent=11 // pred_check
          %p202 = pneg %p61
        $region14: #{deepfake_detector_forward.1} parent=11 // pred_check_branch
          %204 = sbr.rel (%p202) target = $region16
        $region15: #{deepfake_detector_forward.1} parent=11 // pred_region
          _
        $region16: #{deepfake_detector_forward.1} parent=11 // pred_fallthru
          _
        // Predicated region
        $region17: #{deepfake_detector_forward.1} parent=11 // pred_check
          %p205 = pneg %p82
        $region18: #{deepfake_detector_forward.1} parent=11 // pred_check_branch
          %207 = sbr.rel (%p205) target = $region20
        $region19: #{deepfake_detector_forward.1} parent=11 // pred_region
          _
        $region20: #{deepfake_detector_forward.1} parent=11 // pred_fallthru
          _
        // Predicated region
        $region21: #{deepfake_detector_forward.1} parent=11 // pred_check
          %p208 = pneg %p103
        $region22: #{deepfake_detector_forward.1} parent=11 // pred_check_branch
          %210 = sbr.rel (%p208) target = $region24
        $region23: #{deepfake_detector_forward.1} parent=11 // pred_region
          _
        $region24: #{deepfake_detector_forward.1} parent=11 // pred_fallthru
          _
        // Predicated region
        $region25: #{deepfake_detector_forward.1} parent=11 // pred_check
          %p211 = pneg %p124
        $region26: #{deepfake_detector_forward.1} parent=11 // pred_check_branch
          %213 = sbr.rel (%p211) target = $region28
        $region27: #{deepfake_detector_forward.1} parent=11 // pred_region
          _
        $region28: #{deepfake_detector_forward.1} parent=11 // pred_fallthru
          _
        // Predicated region
        $region29: #{deepfake_detector_forward.1} parent=11 // pred_check
          %p214 = pneg %p145
        $region30: #{deepfake_detector_forward.1} parent=11 // pred_check_branch
          %216 = sbr.rel (%p214) target = $region32
        $region31: #{deepfake_detector_forward.1} parent=11 // pred_region
          _
        $region32: #{deepfake_detector_forward.1} parent=11 // pred_fallthru
          _
        // Predicated region
        $region33: #{deepfake_detector_forward.1} parent=11 // pred_check
          %p217 = pneg %p166
        $region34: #{deepfake_detector_forward.1} parent=11 // pred_check_branch
          %219 = sbr.rel (%p217) target = $region36
        $region35: #{deepfake_detector_forward.1} parent=11 // pred_region
          _
        $region36: #{deepfake_detector_forward.1} parent=11 // pred_fallthru
          _
      $region12: #{deepfake_detector_forward.1} parent=5 // pred_fallthru
        _
      %p220 = scmp.lt.s32.totalorder %s14, 2
      // Predicated region
      $region37: #{deepfake_detector_forward.1} parent=5 // pred_check
        %p221 = pneg %p220
      $region38: #{deepfake_detector_forward.1} parent=5 // pred_check_branch
        %223 = sbr.rel (%p221) target = $region40
      $region39: #{deepfake_detector_forward.1} parent=5 // pred_region
        // Predicated region
        $region41: #{deepfake_detector_forward.1} parent=39 // pred_check
          %p224 = pneg %p34
        $region42: #{deepfake_detector_forward.1} parent=39 // pred_check_branch
          %226 = sbr.rel (%p224) target = $region44
        $region43: #{deepfake_detector_forward.1} parent=39 // pred_region
          %s227 = smul.u32 8, %s14
          %p228 = scmp.lt.s32.totalorder %s227, 15
          %s229 = scalar_select %p228, %s227, 15
          %s230 = smul.addr %s229, 2
          %s231 = smul.addr %s230, 4
          %s232 = scalar_lea.vmem %s0, %s231
          %s233 = smul.u32 8, %s14
        $region44: #{deepfake_detector_forward.1} parent=39 // pred_fallthru
          _
      $region40: #{deepfake_detector_forward.1} parent=5 // pred_fallthru
        _
      %p234 = scmp.le.s32.totalorder 1, %s14
      %p235 = scmp.lt.s32.totalorder %s14, 3
      %p236 = pnand %p234, %p235
      %p237 = pneg %p236
      // Predicated region
      $region45: #{deepfake_detector_forward.1} parent=5 // pred_check
        _
      $region46: #{deepfake_detector_forward.1} parent=5 // pred_check_branch
        %239 = sbr.rel (%p236) target = $region48
      $region47: #{deepfake_detector_forward.1} parent=5 // pred_region
        %s240 = ssub.s32 %s14, 1
        %s241 = smul.u32 8, %s19
        %p242 = scmp.lt.s32.totalorder %s241, 15
        %s243 = scalar_select %p242, %s241, 15
        %s244 = smul.addr %s243, 2
        %s245 = smul.addr %s244, 4
        %s246 = scalar_lea.vmem %s0, %s245
        %p247 = pneg %p40
        %p248 = pneg %p37
        %p249 = pneg %p61
        %p250 = pneg %p58
        %p251 = pneg %p82
        %p252 = pneg %p79
        %p253 = pneg %p103
        %p254 = pneg %p100
        %p255 = pneg %p124
        %p256 = pneg %p121
        %p257 = pneg %p145
        %p258 = pneg %p142
        %p259 = pneg %p166
        %p260 = pneg %p163
        %p261 = pneg %p187
        %p262 = pneg %p184
        %s263 = smul.u32 8, %s19
        %p264 = scmp.lt.s32.totalorder %s263, 15
        %s265 = scalar_select %p264, %s263, 15
        %s266 = smul.addr %s265, 2
        %s267 = smul.addr %s266, 4
        %s268 = scalar_lea.vmem %s0, %s267
        %s269 = smul.u32 8, %s19
        %p271 = scmp.eq.s32.totalorder %s19, 0
        // Predicated region
        $region49: #{deepfake_detector_forward.1} parent=47 // pred_check
          %p272 = pneg %p271
        $region50: #{deepfake_detector_forward.1} parent=47 // pred_check_branch
          %274 = sbr.rel (%p272) target = $region52
        $region51: #{deepfake_detector_forward.1} parent=47 // pred_region
          %vm275 = vcmask 519168
          %276 = vst.msk [vmem:[#allocation2] sm:$0xf] %vm275, 0
          %277 = vst.msk [vmem:[#allocation2 + $0x4] sm:$0xf] %vm275, 0
          %vm278 = vcmask 516096
          %279 = vst.msk [vmem:[#allocation2 + $0x8] sm:$0x1] %vm278, 0
          %280 = vst.msk [vmem:[#allocation2 + $0xc] sm:$0xf] %vm275, 0
          %281 = vst.msk [vmem:[#allocation2 + $0x10] sm:$0xf] %vm275, 0
          %282 = vst.msk [vmem:[#allocation2 + $0x14] sm:$0x1] %vm278, 0
          %283 = vst.msk [vmem:[#allocation2 + $0x18] sm:$0xf] %vm275, 0
          %284 = vst.msk [vmem:[#allocation2 + $0x1c] sm:$0xf] %vm275, 0
          %285 = vst.msk [vmem:[#allocation2 + $0x20] sm:$0x1] %vm278, 0
          %286 = vst.msk [vmem:[#allocation2 + $0x24] sm:$0xf] %vm275, 0
          %287 = vst.msk [vmem:[#allocation2 + $0x28] sm:$0xf] %vm275, 0
          %288 = vst.msk [vmem:[#allocation2 + $0x2c] sm:$0x1] %vm278, 0
          %289 = vst.msk [vmem:[#allocation2 + $0x30] sm:$0xf] %vm275, 0
          %290 = vst.msk [vmem:[#allocation2 + $0x34] sm:$0xf] %vm275, 0
          %291 = vst.msk [vmem:[#allocation2 + $0x38] sm:$0x1] %vm278, 0
          %292 = vst.msk [vmem:[#allocation2 + $0x3c] sm:$0xf] %vm275, 0
          %293 = vst.msk [vmem:[#allocation2 + $0x40] sm:$0xf] %vm275, 0
          %294 = vst.msk [vmem:[#allocation2 + $0x44] sm:$0x1] %vm278, 0
          %295 = vst.msk [vmem:[#allocation2 + $0x48] sm:$0xf] %vm275, 0
          %296 = vst.msk [vmem:[#allocation2 + $0x4c] sm:$0xf] %vm275, 0
          %297 = vst.msk [vmem:[#allocation2 + $0x50] sm:$0x1] %vm278, 0
          %298 = vst.msk [vmem:[#allocation2 + $0x54] sm:$0xf] %vm275, 0
          %299 = vst.msk [vmem:[#allocation2 + $0x58] sm:$0xf] %vm275, 0
          %300 = vst.msk [vmem:[#allocation2 + $0x5c] sm:$0x1] %vm278, 0
        $region52: #{deepfake_detector_forward.1} parent=47 // pred_fallthru
          _
        %v301 = vld [vmem:[%s268] sm:$0xf]
        %v302 = vld [vmem:[%s268 + $0x4] sm:$0xf]
        %v303 = vld [vmem:[%s268 + $0x8] sm:$0xf]
        %v304 = vld [vmem:[%s268 + $0xc] sm:$0xf]
        %v305 = vld [vmem:[%s268 + $0x10] sm:$0xf]
        %v306 = vld [vmem:[%s268 + $0x14] sm:$0xf]
        %v307 = vld [vmem:[%s268 + $0x18] sm:$0xf]
        %v308 = vld [vmem:[%s268 + $0x1c] sm:$0xf]
        %v309 = vld [vmem:[%s268 + $0x20] sm:$0xf]
        %v310 = vld [vmem:[%s268 + $0x24] sm:$0xf]
        %v311 = vld [vmem:[%s268 + $0x28] sm:$0xf]
        %v312 = vld [vmem:[%s268 + $0x2c] sm:$0xf]
        %v313 = vld [vmem:[%s268 + $0x30] sm:$0xf]
        %v314 = vld [vmem:[%s268 + $0x34] sm:$0xf]
        %v315 = vld [vmem:[%s268 + $0x38] sm:$0xf]
        %v316 = vld [vmem:[%s268 + $0x3c] sm:$0xf]
        %vm317 = vsmask.f32 256
        %vm318 = vsmask.f32 4368
        %vm319 = vmor %vm317, %vm318
        %v321 = vshrl.u32 %v301, 16
        %v323 = vrot.slane %v321, 7
        %v324 = vshll.u32 %v301, 16
        %v326 = vor.u32 %v323, %v324
        %v327 = vrot.slane %v323, 4
        %v329 = vshrl.u32 %v302, 16
        %v331 = vrot.slane %v329, 7
        %v332 = vshll.u32 %v302, 16
        %v334 = vor.u32 %v331, %v332
        %v335 = vsel %vm319, %v327, %v334
        %v336 = vrot.slane %v331, 4
        %v338 = vshrl.u32 %v303, 16
        %v340 = vrot.slane %v338, 7
        %v341 = vshll.u32 %v303, 16
        %v343 = vor.u32 %v340, %v341
        %v344 = vrot.slane %v340, 4
        %v346 = vshrl.u32 %v304, 16
        %v348 = vrot.slane %v346, 7
        %v349 = vshll.u32 %v304, 16
        %v351 = vor.u32 %v348, %v349
        %v352 = vsel %vm319, %v344, %v351
        %v353 = vrot.slane %v348, 4
        %v355 = vshrl.u32 %v305, 16
        %v357 = vrot.slane %v355, 7
        %v358 = vshll.u32 %v305, 16
        %v360 = vor.u32 %v357, %v358
        %v361 = vrot.slane %v357, 4
        %v363 = vshrl.u32 %v306, 16
        %v365 = vrot.slane %v363, 7
        %v366 = vshll.u32 %v306, 16
        %v368 = vor.u32 %v365, %v366
        %v369 = vsel %vm319, %v361, %v368
        %v370 = vrot.slane %v365, 4
        %v372 = vshrl.u32 %v307, 16
        %v374 = vrot.slane %v372, 7
        %v375 = vshll.u32 %v307, 16
        %v377 = vor.u32 %v374, %v375
        %v378 = vrot.slane %v374, 4
        %v380 = vshrl.u32 %v308, 16
        %v382 = vrot.slane %v380, 7
        %v383 = vshll.u32 %v308, 16
        %v385 = vor.u32 %v382, %v383
        %v386 = vsel %vm319, %v378, %v385
        %v387 = vrot.slane %v382, 4
        %v389 = vshrl.u32 %v309, 16
        %v391 = vrot.slane %v389, 7
        %v392 = vshll.u32 %v309, 16
        %v394 = vor.u32 %v391, %v392
        %v395 = vrot.slane %v391, 4
        %v397 = vshrl.u32 %v310, 16
        %v399 = vrot.slane %v397, 7
        %v400 = vshll.u32 %v310, 16
        %v402 = vor.u32 %v399, %v400
        %v403 = vsel %vm319, %v395, %v402
        %v404 = vrot.slane %v399, 4
        %v406 = vshrl.u32 %v311, 16
        %v408 = vrot.slane %v406, 7
        %v409 = vshll.u32 %v311, 16
        %v411 = vor.u32 %v408, %v409
        %v412 = vrot.slane %v408, 4
        %v414 = vshrl.u32 %v312, 16
        %v416 = vrot.slane %v414, 7
        %v417 = vshll.u32 %v312, 16
        %v419 = vor.u32 %v416, %v417
        %v420 = vsel %vm319, %v412, %v419
        %v421 = vrot.slane %v416, 4
        %v423 = vshrl.u32 %v313, 16
        %v425 = vrot.slane %v423, 7
        %v426 = vshll.u32 %v313, 16
        %v428 = vor.u32 %v425, %v426
        %v429 = vrot.slane %v425, 4
        %v431 = vshrl.u32 %v314, 16
        %v433 = vrot.slane %v431, 7
        %v434 = vshll.u32 %v314, 16
        %v436 = vor.u32 %v433, %v434
        %v437 = vsel %vm319, %v429, %v436
        %v438 = vrot.slane %v433, 4
        %v440 = vshrl.u32 %v315, 16
        %v442 = vrot.slane %v440, 7
        %v443 = vshll.u32 %v315, 16
        %v445 = vor.u32 %v442, %v443
        %v446 = vrot.slane %v442, 4
        %v448 = vshrl.u32 %v316, 16
        %v450 = vrot.slane %v448, 7
        %v451 = vshll.u32 %v316, 16
        %v453 = vor.u32 %v450, %v451
        %v454 = vsel %vm319, %v446, %v453
        %v455 = vrot.slane %v450, 4
        %vm480 = vcmask 519168
        %vm481 = vsmask.f32 7938
        %vm482 = vmand %vm480, %vm481
        %v483 = vld [vmem:[#allocation2] sm:$0xf]
        %v484 = vsel %vm482, %v326, %v483
        %485 = vst [vmem:[#allocation2] sm:$0xf] %v484
        %vm486 = vcmask 519168
        %487 = vst.msk [vmem:[#allocation2 + $0x4] sm:$0xf] %vm486, %v335
        %vm488 = vcmask 516096
        %vm489 = vmand %vm488, %vm317
        %v490 = vld [vmem:[#allocation2 + $0x8] sm:$0x1]
        %v491 = vsel %vm489, %v336, %v490
        %492 = vst [vmem:[#allocation2 + $0x8] sm:$0x1] %v491
        %v493 = vld [vmem:[#allocation2 + $0xc] sm:$0xf]
        %v494 = vsel %vm482, %v343, %v493
        %495 = vst [vmem:[#allocation2 + $0xc] sm:$0xf] %v494
        %496 = vst.msk [vmem:[#allocation2 + $0x10] sm:$0xf] %vm486, %v352
        %v497 = vld [vmem:[#allocation2 + $0x14] sm:$0x1]
        %v498 = vsel %vm489, %v353, %v497
        %499 = vst [vmem:[#allocation2 + $0x14] sm:$0x1] %v498
        %v500 = vld [vmem:[#allocation2 + $0x18] sm:$0xf]
        %v501 = vsel %vm482, %v360, %v500
        %502 = vst [vmem:[#allocation2 + $0x18] sm:$0xf] %v501
        %503 = vst.msk [vmem:[#allocation2 + $0x1c] sm:$0xf] %vm486, %v369
        %v504 = vld [vmem:[#allocation2 + $0x20] sm:$0x1]
        %v505 = vsel %vm489, %v370, %v504
        %506 = vst [vmem:[#allocation2 + $0x20] sm:$0x1] %v505
        %v507 = vld [vmem:[#allocation2 + $0x24] sm:$0xf]
        %v508 = vsel %vm482, %v377, %v507
        %509 = vst [vmem:[#allocation2 + $0x24] sm:$0xf] %v508
        %510 = vst.msk [vmem:[#allocation2 + $0x28] sm:$0xf] %vm486, %v386
        %v511 = vld [vmem:[#allocation2 + $0x2c] sm:$0x1]
        %v512 = vsel %vm489, %v387, %v511
        %513 = vst [vmem:[#allocation2 + $0x2c] sm:$0x1] %v512
        %v514 = vld [vmem:[#allocation2 + $0x30] sm:$0xf]
        %v515 = vsel %vm482, %v394, %v514
        %516 = vst [vmem:[#allocation2 + $0x30] sm:$0xf] %v515
        %517 = vst.msk [vmem:[#allocation2 + $0x34] sm:$0xf] %vm486, %v403
        %v518 = vld [vmem:[#allocation2 + $0x38] sm:$0x1]
        %v519 = vsel %vm489, %v404, %v518
        %520 = vst [vmem:[#allocation2 + $0x38] sm:$0x1] %v519
        %v521 = vld [vmem:[#allocation2 + $0x3c] sm:$0xf]
        %v522 = vsel %vm482, %v411, %v521
        %523 = vst [vmem:[#allocation2 + $0x3c] sm:$0xf] %v522
        %524 = vst.msk [vmem:[#allocation2 + $0x40] sm:$0xf] %vm486, %v420
        %v525 = vld [vmem:[#allocation2 + $0x44] sm:$0x1]
        %v526 = vsel %vm489, %v421, %v525
        %527 = vst [vmem:[#allocation2 + $0x44] sm:$0x1] %v526
        %v528 = vld [vmem:[#allocation2 + $0x48] sm:$0xf]
        %v529 = vsel %vm482, %v428, %v528
        %530 = vst [vmem:[#allocation2 + $0x48] sm:$0xf] %v529
        %531 = vst.msk [vmem:[#allocation2 + $0x4c] sm:$0xf] %vm486, %v437
        %v532 = vld [vmem:[#allocation2 + $0x50] sm:$0x1]
        %v533 = vsel %vm489, %v438, %v532
        %534 = vst [vmem:[#allocation2 + $0x50] sm:$0x1] %v533
        %v535 = vld [vmem:[#allocation2 + $0x54] sm:$0xf]
        %v536 = vsel %vm482, %v445, %v535
        %537 = vst [vmem:[#allocation2 + $0x54] sm:$0xf] %v536
        %538 = vst.msk [vmem:[#allocation2 + $0x58] sm:$0xf] %vm486, %v454
        %v539 = vld [vmem:[#allocation2 + $0x5c] sm:$0x1]
        %v540 = vsel %vm489, %v455, %v539
        %541 = vst [vmem:[#allocation2 + $0x5c] sm:$0x1] %v540
        %v542 = vld [vmem:[#allocation2] sm:$0xf]
        %v543 = vld [vmem:[#allocation2 + $0x4] sm:$0xf]
        %v544 = vld [vmem:[#allocation2 + $0xc] sm:$0xf]
        %v545 = vld [vmem:[#allocation2 + $0x10] sm:$0xf]
        %v546 = vld [vmem:[#allocation2 + $0x18] sm:$0xf]
        %v547 = vld [vmem:[#allocation2 + $0x1c] sm:$0xf]
        %v548 = vld [vmem:[#allocation2 + $0x24] sm:$0xf]
        %v549 = vld [vmem:[#allocation2 + $0x28] sm:$0xf]
        %v550 = vld [vmem:[#allocation2 + $0x30] sm:$0xf]
        %v551 = vld [vmem:[#allocation2 + $0x34] sm:$0xf]
        %v552 = vld [vmem:[#allocation2 + $0x3c] sm:$0xf]
        %v553 = vld [vmem:[#allocation2 + $0x40] sm:$0xf]
        %v554 = vld [vmem:[#allocation2 + $0x48] sm:$0xf]
        %v555 = vld [vmem:[#allocation2 + $0x4c] sm:$0xf]
        %v556 = vld [vmem:[#allocation2 + $0x54] sm:$0xf]
        %v557 = vld [vmem:[#allocation2 + $0x58] sm:$0xf]
        %v558 = vld [vmem:[%s1] sm:$0xf]
        %v559 = vld [vmem:[%s1 + $0x4] sm:$0xf]
        %v560 = vld [vmem:[%s1 + $0x8] sm:$0xf]
        %v561 = vld [vmem:[%s1 + $0xc] sm:$0xf]
        %v562 = vld [vmem:[%s1 + $0x10] sm:$0xf]
        %v563 = vld [vmem:[%s1 + $0x14] sm:$0xf]
        %v564 = vld [vmem:[%s1 + $0x18] sm:$0xf]
        %v565 = vld [vmem:[%s1 + $0x1c] sm:$0xf]
        %v566 = vld [vmem:[#allocation2 + $0x8] sm:$0x1]
        %v567 = vld [vmem:[#allocation2 + $0x14] sm:$0x1]
        %v568 = vld [vmem:[#allocation2 + $0x20] sm:$0x1]
        %v569 = vld [vmem:[#allocation2 + $0x2c] sm:$0x1]
        %v570 = vld [vmem:[#allocation2 + $0x38] sm:$0x1]
        %v571 = vld [vmem:[#allocation2 + $0x44] sm:$0x1]
        %v572 = vld [vmem:[#allocation2 + $0x50] sm:$0x1]
        %v573 = vld [vmem:[#allocation2 + $0x5c] sm:$0x1]
        %vm574 = vsmask.f32 3328
        %vm575 = vsmask.f32 7440
        %vm576 = vmor %vm574, %vm575
        %v578 = vshrl.u32 %v542, 16
        %v580 = vrot.slane %v578, 4
        %v581 = vshll.u32 %v542, 16
        %v583 = vrot.slane %v581, 5
        %v584 = vor.u32 %v580, %v583
        %v585 = vrot.slane %v584, 4
        %v587 = vshll.u32 %v543, 16
        %v589 = vrot.slane %v587, 5
        %v590 = vsel %vm576, %v585, %v589
        %v591 = vshrl.u32 %v543, 16
        %v593 = vrot.slane %v591, 4
        %v594 = vor.u32 %v593, %v589
        %v595 = vrot.slane %v594, 4
        %v597 = vshll.u32 %v566, 16
        %v599 = vrot.slane %v597, 5
        %v600 = vsel %vm576, %v595, %v599
        %v602 = vshrl.u32 %v544, 16
        %v604 = vrot.slane %v602, 4
        %v605 = vshll.u32 %v544, 16
        %v607 = vrot.slane %v605, 5
        %v608 = vor.u32 %v604, %v607
        %v609 = vrot.slane %v608, 4
        %v611 = vshll.u32 %v545, 16
        %v613 = vrot.slane %v611, 5
        %v614 = vsel %vm576, %v609, %v613
        %v615 = vshrl.u32 %v545, 16
        %v617 = vrot.slane %v615, 4
        %v618 = vor.u32 %v617, %v613
        %v619 = vrot.slane %v618, 4
        %v621 = vshll.u32 %v567, 16
        %v623 = vrot.slane %v621, 5
        %v624 = vsel %vm576, %v619, %v623
        %v626 = vshrl.u32 %v546, 16
        %v628 = vrot.slane %v626, 4
        %v629 = vshll.u32 %v546, 16
        %v631 = vrot.slane %v629, 5
        %v632 = vor.u32 %v628, %v631
        %v633 = vrot.slane %v632, 4
        %v635 = vshll.u32 %v547, 16
        %v637 = vrot.slane %v635, 5
        %v638 = vsel %vm576, %v633, %v637
        %v639 = vshrl.u32 %v547, 16
        %v641 = vrot.slane %v639, 4
        %v642 = vor.u32 %v641, %v637
        %v643 = vrot.slane %v642, 4
        %v645 = vshll.u32 %v568, 16
        %v647 = vrot.slane %v645, 5
        %v648 = vsel %vm576, %v643, %v647
        %v650 = vshrl.u32 %v548, 16
        %v652 = vrot.slane %v650, 4
        %v653 = vshll.u32 %v548, 16
        %v655 = vrot.slane %v653, 5
        %v656 = vor.u32 %v652, %v655
        %v657 = vrot.slane %v656, 4
        %v659 = vshll.u32 %v549, 16
        %v661 = vrot.slane %v659, 5
        %v662 = vsel %vm576, %v657, %v661
        %v663 = vshrl.u32 %v549, 16
        %v665 = vrot.slane %v663, 4
        %v666 = vor.u32 %v665, %v661
        %v667 = vrot.slane %v666, 4
        %v669 = vshll.u32 %v569, 16
        %v671 = vrot.slane %v669, 5
        %v672 = vsel %vm576, %v667, %v671
        %v674 = vshrl.u32 %v550, 16
        %v676 = vrot.slane %v674, 4
        %v677 = vshll.u32 %v550, 16
        %v679 = vrot.slane %v677, 5
        %v680 = vor.u32 %v676, %v679
        %v681 = vrot.slane %v680, 4
        %v683 = vshll.u32 %v551, 16
        %v685 = vrot.slane %v683, 5
        %v686 = vsel %vm576, %v681, %v685
        %v687 = vshrl.u32 %v551, 16
        %v689 = vrot.slane %v687, 4
        %v690 = vor.u32 %v689, %v685
        %v691 = vrot.slane %v690, 4
        %v693 = vshll.u32 %v570, 16
        %v695 = vrot.slane %v693, 5
        %v696 = vsel %vm576, %v691, %v695
        %v698 = vshrl.u32 %v552, 16
        %v700 = vrot.slane %v698, 4
        %v701 = vshll.u32 %v552, 16
        %v703 = vrot.slane %v701, 5
        %v704 = vor.u32 %v700, %v703
        %v705 = vrot.slane %v704, 4
        %v707 = vshll.u32 %v553, 16
        %v709 = vrot.slane %v707, 5
        %v710 = vsel %vm576, %v705, %v709
        %v711 = vshrl.u32 %v553, 16
        %v713 = vrot.slane %v711, 4
        %v714 = vor.u32 %v713, %v709
        %v715 = vrot.slane %v714, 4
        %v717 = vshll.u32 %v571, 16
        %v719 = vrot.slane %v717, 5
        %v720 = vsel %vm576, %v715, %v719
        %v722 = vshrl.u32 %v554, 16
        %v724 = vrot.slane %v722, 4
        %v725 = vshll.u32 %v554, 16
        %v727 = vrot.slane %v725, 5
        %v728 = vor.u32 %v724, %v727
        %v729 = vrot.slane %v728, 4
        %v731 = vshll.u32 %v555, 16
        %v733 = vrot.slane %v731, 5
        %v734 = vsel %vm576, %v729, %v733
        %v735 = vshrl.u32 %v555, 16
        %v737 = vrot.slane %v735, 4
        %v738 = vor.u32 %v737, %v733
        %v739 = vrot.slane %v738, 4
        %v741 = vshll.u32 %v572, 16
        %v743 = vrot.slane %v741, 5
        %v744 = vsel %vm576, %v739, %v743
        %v746 = vshrl.u32 %v556, 16
        %v748 = vrot.slane %v746, 4
        %v749 = vshll.u32 %v556, 16
        %v751 = vrot.slane %v749, 5
        %v752 = vor.u32 %v748, %v751
        %v753 = vrot.slane %v752, 4
        %v755 = vshll.u32 %v557, 16
        %v757 = vrot.slane %v755, 5
        %v758 = vsel %vm576, %v753, %v757
        %v759 = vshrl.u32 %v557, 16
        %v761 = vrot.slane %v759, 4
        %v762 = vor.u32 %v761, %v757
        %v763 = vrot.slane %v762, 4
        %v765 = vshll.u32 %v573, 16
        %v767 = vrot.slane %v765, 5
        %v768 = vsel %vm576, %v763, %v767
        %s769 = scalar_lea.vmem %s1, 32
        %v770 = vld [vmem:[%s769] sm:$0xf]
        %v771 = vld [vmem:[%s769 + $0x4] sm:$0xf]
        %v772 = vld [vmem:[%s769 + $0x8] sm:$0xf]
        %v773 = vld [vmem:[%s769 + $0xc] sm:$0xf]
        %v774 = vld [vmem:[%s769 + $0x10] sm:$0xf]
        %v775 = vld [vmem:[%s769 + $0x14] sm:$0xf]
        %v776 = vld [vmem:[%s769 + $0x18] sm:$0xf]
        %v777 = vld [vmem:[%s769 + $0x1c] sm:$0xf]
        %v778 = vunpack.c.l.b16 %v590
        %v779 = vunpack.c.l.b16 %v600
        %v780 = vunpack.c.l.b16 %v614
        %v781 = vunpack.c.l.b16 %v624
        %v782 = vunpack.c.l.b16 %v638
        %v783 = vunpack.c.l.b16 %v648
        %v784 = vunpack.c.l.b16 %v662
        %v785 = vunpack.c.l.b16 %v672
        %v786 = vunpack.c.l.b16 %v686
        %v787 = vunpack.c.l.b16 %v696
        %v788 = vunpack.c.l.b16 %v710
        %v789 = vunpack.c.l.b16 %v720
        %v790 = vunpack.c.l.b16 %v734
        %v791 = vunpack.c.l.b16 %v744
        %v792 = vunpack.c.l.b16 %v758
        %v793 = vunpack.c.l.b16 %v768
        %v794 = vpack.c.b16 %v779, %v778
        %v795 = vpack.c.b16 %v781, %v780
        %v796 = vpack.c.b16 %v783, %v782
        %v797 = vpack.c.b16 %v785, %v784
        %v798 = vpack.c.b16 %v787, %v786
        %v799 = vpack.c.b16 %v789, %v788
        %v800 = vpack.c.b16 %v791, %v790
        %v801 = vpack.c.b16 %v793, %v792
        %v810 = vunpack.c.l.b16 %v770
        %v811 = vunpack.c.l.b16 %v771
        %v812 = vunpack.c.l.b16 %v772
        %v813 = vunpack.c.l.b16 %v773
        %v814 = vunpack.c.l.b16 %v774
        %v815 = vunpack.c.l.b16 %v775
        %v816 = vunpack.c.l.b16 %v776
        %v817 = vunpack.c.l.b16 %v777
        %v818 = vpack.c.b16 %v811, %v810
        %v819 = vpack.c.b16 %v813, %v812
        %v820 = vpack.c.b16 %v815, %v814
        %v821 = vpack.c.b16 %v817, %v816
        %vm826 = vcmask 523264
        %v828 = vsel %vm826, %v794, 0
        %v831 = vsel %vm826, %v795, 0
        %v834 = vsel %vm826, %v796, 0
        %v837 = vsel %vm826, %v797, 0
        %v840 = vsel %vm826, %v798, 0
        %v843 = vsel %vm826, %v799, 0
        %v846 = vsel %vm826, %v800, 0
        %v849 = vsel %vm826, %v801, 0
        %851 = vmatprep.subr.bf16.mxu0 0
        %852 = vmatpush1.bf16.msra.mxu0 0
        %853 = vmatprep.subr.bf16.mxu0 0
        %854 = vmatpush1.bf16.msra.mxu0 0
        %855 = vmatprep.subr.bf16.mxu0 0
        %856 = vmatpush1.bf16.msra.mxu0 0
        %857 = vmatprep.subr.bf16.mxu0 0
        %858 = vmatpush1.bf16.msra.mxu0 0
        %859 = vmatprep.subr.bf16.mxu0 0
        %860 = vmatpush1.bf16.msra.mxu0 %v821
        %861 = vmatprep.subr.bf16.mxu0 0
        %862 = vmatpush1.bf16.msra.mxu0 %v820
        %863 = vmatprep.subr.bf16.mxu0 0
        %864 = vmatpush1.bf16.msra.mxu0 %v819
        %865 = vmatprep.subr.bf16.mxu0 0
        %866 = vmatpush1.bf16.msra.mxu0 %v818
        %867 = vmatprep.subr.bf16.mxu0 0
        %868 = vmatpush2.bf16.msra.mxu0 0
        %869 = vmatprep.subr.bf16.mxu0 0
        %870 = vmatpush2.bf16.msra.mxu0 0
        %871 = vmatprep.subr.bf16.mxu0 0
        %872 = vmatpush2.bf16.msra.mxu0 0
        %873 = vmatprep.subr.bf16.mxu0 0
        %874 = vmatpush2.bf16.msra.mxu0 0
        %875 = vmatprep.subr.bf16.mxu0 0
        %876 = vmatpush2.bf16.msra.mxu0 0
        %877 = vmatprep.subr.bf16.mxu0 0
        %878 = vmatpush2.bf16.msra.mxu0 0
        %879 = vmatprep.subr.bf16.mxu0 0
        %880 = vmatpush2.bf16.msra.mxu0 0
        %881 = vmatprep.subr.bf16.mxu0 0
        %882 = vmatpush2.bf16.msra.mxu0 0
        %883 = vmatprep.mubr.bf16.mxu0 0
        %884 = vmatmul.mubr.bf16.gmra.mxu0 %v828
        %v885 = vpop.f32.mrf.mxu0
        %v886 = vadd.f32 0.0, %v885
        %v887 = vpop.f32.mrf.mxu0
        %v888 = vpop.f32.mrf.mxu0
        %v889 = vadd.f32 0.0, %v888
        %v890 = vpop.f32.mrf.mxu0
        %891 = vmatprep.mubr.bf16.mxu0 0
        %892 = vmatmul.mubr.bf16.gmra.mxu0 %v831
        %v893 = vpop.f32.mrf.mxu0
        %v894 = vadd.f32 0.0, %v893
        %v895 = vpop.f32.mrf.mxu0
        %v896 = vpop.f32.mrf.mxu0
        %v897 = vadd.f32 0.0, %v896
        %v898 = vpop.f32.mrf.mxu0
        %899 = vmatprep.mubr.bf16.mxu0 0
        %900 = vmatmul.mubr.bf16.gmra.mxu0 %v834
        %v901 = vpop.f32.mrf.mxu0
        %v902 = vadd.f32 0.0, %v901
        %v903 = vpop.f32.mrf.mxu0
        %v904 = vpop.f32.mrf.mxu0
        %v905 = vadd.f32 0.0, %v904
        %v906 = vpop.f32.mrf.mxu0
        %907 = vmatprep.mubr.bf16.mxu0 0
        %908 = vmatmul.mubr.bf16.gmra.mxu0 %v837
        %v909 = vpop.f32.mrf.mxu0
        %v910 = vadd.f32 0.0, %v909
        %v911 = vpop.f32.mrf.mxu0
        %v912 = vpop.f32.mrf.mxu0
        %v913 = vadd.f32 0.0, %v912
        %v914 = vpop.f32.mrf.mxu0
        %915 = vmatprep.mubr.bf16.mxu0 0
        %916 = vmatmul.mubr.bf16.gmra.mxu0 %v840
        %v917 = vpop.f32.mrf.mxu0
        %v918 = vadd.f32 0.0, %v917
        %v919 = vpop.f32.mrf.mxu0
        %v920 = vpop.f32.mrf.mxu0
        %v921 = vadd.f32 0.0, %v920
        %v922 = vpop.f32.mrf.mxu0
        %923 = vmatprep.mubr.bf16.mxu0 0
        %924 = vmatmul.mubr.bf16.gmra.mxu0 %v843
        %v925 = vpop.f32.mrf.mxu0
        %v926 = vadd.f32 0.0, %v925
        %v927 = vpop.f32.mrf.mxu0
        %v928 = vpop.f32.mrf.mxu0
        %v929 = vadd.f32 0.0, %v928
        %v930 = vpop.f32.mrf.mxu0
        %931 = vmatprep.mubr.bf16.mxu0 0
        %932 = vmatmul.mubr.bf16.gmra.mxu0 %v846
        %v933 = vpop.f32.mrf.mxu0
        %v934 = vadd.f32 0.0, %v933
        %v935 = vpop.f32.mrf.mxu0
        %v936 = vpop.f32.mrf.mxu0
        %v937 = vadd.f32 0.0, %v936
        %v938 = vpop.f32.mrf.mxu0
        %939 = vmatprep.mubr.bf16.mxu0 0
        %940 = vmatmul.mubr.bf16.gmra.mxu0 %v849
        %v941 = vpop.f32.mrf.mxu0
        %v942 = vadd.f32 0.0, %v941
        %v943 = vpop.f32.mrf.mxu0
        %v944 = vpop.f32.mrf.mxu0
        %v945 = vadd.f32 0.0, %v944
        %v946 = vpop.f32.mrf.mxu0
        %947 = vdwg.mxu0
        %v964 = vunpack.c.l.b16 %v542
        %v965 = vunpack.c.l.b16 %v543
        %v966 = vunpack.c.l.b16 %v544
        %v967 = vunpack.c.l.b16 %v545
        %v968 = vunpack.c.l.b16 %v546
        %v969 = vunpack.c.l.b16 %v547
        %v970 = vunpack.c.l.b16 %v548
        %v971 = vunpack.c.l.b16 %v549
        %v972 = vunpack.c.l.b16 %v550
        %v973 = vunpack.c.l.b16 %v551
        %v974 = vunpack.c.l.b16 %v552
        %v975 = vunpack.c.l.b16 %v553
        %v976 = vunpack.c.l.b16 %v554
        %v977 = vunpack.c.l.b16 %v555
        %v978 = vunpack.c.l.b16 %v556
        %v979 = vunpack.c.l.b16 %v557
        %v980 = vpack.c.b16 %v965, %v964
        %v981 = vpack.c.b16 %v967, %v966
        %v982 = vpack.c.b16 %v969, %v968
        %v983 = vpack.c.b16 %v971, %v970
        %v984 = vpack.c.b16 %v973, %v972
        %v985 = vpack.c.b16 %v975, %v974
        %v986 = vpack.c.b16 %v977, %v976
        %v987 = vpack.c.b16 %v979, %v978
        %v996 = vunpack.c.l.b16 %v558
        %v997 = vunpack.c.l.b16 %v559
        %v998 = vunpack.c.l.b16 %v560
        %v999 = vunpack.c.l.b16 %v561
        %v1000 = vunpack.c.l.b16 %v562
        %v1001 = vunpack.c.l.b16 %v563
        %v1002 = vunpack.c.l.b16 %v564
        %v1003 = vunpack.c.l.b16 %v565
        %v1004 = vpack.c.b16 %v997, %v996
        %v1005 = vpack.c.b16 %v999, %v998
        %v1006 = vpack.c.b16 %v1001, %v1000
        %v1007 = vpack.c.b16 %v1003, %v1002
        %v1013 = vsel %vm826, %v980, 0
        %v1016 = vsel %vm826, %v981, 0
        %v1019 = vsel %vm826, %v982, 0
        %v1022 = vsel %vm826, %v983, 0
        %v1025 = vsel %vm826, %v984, 0
        %v1028 = vsel %vm826, %v985, 0
        %v1031 = vsel %vm826, %v986, 0
        %v1034 = vsel %vm826, %v987, 0
        %1036 = vmatprep.subr.bf16.mxu0 0
        %1037 = vmatpush1.bf16.msra.mxu0 0
        %1038 = vmatprep.subr.bf16.mxu0 0
        %1039 = vmatpush1.bf16.msra.mxu0 0
        %1040 = vmatprep.subr.bf16.mxu0 0
        %1041 = vmatpush1.bf16.msra.mxu0 0
        %1042 = vmatprep.subr.bf16.mxu0 0
        %1043 = vmatpush1.bf16.msra.mxu0 0
        %1044 = vmatprep.subr.bf16.mxu0 0
        %1045 = vmatpush1.bf16.msra.mxu0 %v1007
        %1046 = vmatprep.subr.bf16.mxu0 0
        %1047 = vmatpush1.bf16.msra.mxu0 %v1006
        %1048 = vmatprep.subr.bf16.mxu0 0
        %1049 = vmatpush1.bf16.msra.mxu0 %v1005
        %1050 = vmatprep.subr.bf16.mxu0 0
        %1051 = vmatpush1.bf16.msra.mxu0 %v1004
        %1052 = vmatprep.subr.bf16.mxu0 0
        %1053 = vmatpush2.bf16.msra.mxu0 0
        %1054 = vmatprep.subr.bf16.mxu0 0
        %1055 = vmatpush2.bf16.msra.mxu0 0
        %1056 = vmatprep.subr.bf16.mxu0 0
        %1057 = vmatpush2.bf16.msra.mxu0 0
        %1058 = vmatprep.subr.bf16.mxu0 0
        %1059 = vmatpush2.bf16.msra.mxu0 0
        %1060 = vmatprep.subr.bf16.mxu0 0
        %1061 = vmatpush2.bf16.msra.mxu0 0
        %1062 = vmatprep.subr.bf16.mxu0 0
        %1063 = vmatpush2.bf16.msra.mxu0 0
        %1064 = vmatprep.subr.bf16.mxu0 0
        %1065 = vmatpush2.bf16.msra.mxu0 0
        %1066 = vmatprep.subr.bf16.mxu0 0
        %1067 = vmatpush2.bf16.msra.mxu0 0
        %1068 = vmatprep.mubr.bf16.mxu0 0
        %1069 = vmatmul.mubr.bf16.gmra.mxu0 %v1013
        %v1070 = vpop.f32.mrf.mxu0
        %v1071 = vadd.f32 %v886, %v1070
        %v1072 = vpop.f32.mrf.mxu0
        %v1073 = vpop.f32.mrf.mxu0
        %v1074 = vadd.f32 %v889, %v1073
        %v1075 = vpop.f32.mrf.mxu0
        %1076 = vmatprep.mubr.bf16.mxu0 0
        %1077 = vmatmul.mubr.bf16.gmra.mxu0 %v1016
        %v1078 = vpop.f32.mrf.mxu0
        %v1079 = vadd.f32 %v894, %v1078
        %v1080 = vpop.f32.mrf.mxu0
        %v1081 = vpop.f32.mrf.mxu0
        %v1082 = vadd.f32 %v897, %v1081
        %v1083 = vpop.f32.mrf.mxu0
        %1084 = vmatprep.mubr.bf16.mxu0 0
        %1085 = vmatmul.mubr.bf16.gmra.mxu0 %v1019
        %v1086 = vpop.f32.mrf.mxu0
        %v1087 = vadd.f32 %v902, %v1086
        %v1088 = vpop.f32.mrf.mxu0
        %v1089 = vpop.f32.mrf.mxu0
        %v1090 = vadd.f32 %v905, %v1089
        %v1091 = vpop.f32.mrf.mxu0
        %1092 = vmatprep.mubr.bf16.mxu0 0
        %1093 = vmatmul.mubr.bf16.gmra.mxu0 %v1022
        %v1094 = vpop.f32.mrf.mxu0
        %v1095 = vadd.f32 %v910, %v1094
        %v1096 = vpop.f32.mrf.mxu0
        %v1097 = vpop.f32.mrf.mxu0
        %v1098 = vadd.f32 %v913, %v1097
        %v1099 = vpop.f32.mrf.mxu0
        %1100 = vmatprep.mubr.bf16.mxu0 0
        %1101 = vmatmul.mubr.bf16.gmra.mxu0 %v1025
        %v1102 = vpop.f32.mrf.mxu0
        %v1103 = vadd.f32 %v918, %v1102
        %v1104 = vpop.f32.mrf.mxu0
        %v1105 = vpop.f32.mrf.mxu0
        %v1106 = vadd.f32 %v921, %v1105
        %v1107 = vpop.f32.mrf.mxu0
        %1108 = vmatprep.mubr.bf16.mxu0 0
        %1109 = vmatmul.mubr.bf16.gmra.mxu0 %v1028
        %v1110 = vpop.f32.mrf.mxu0
        %v1111 = vadd.f32 %v926, %v1110
        %v1112 = vpop.f32.mrf.mxu0
        %v1113 = vpop.f32.mrf.mxu0
        %v1114 = vadd.f32 %v929, %v1113
        %v1115 = vpop.f32.mrf.mxu0
        %1116 = vmatprep.mubr.bf16.mxu0 0
        %1117 = vmatmul.mubr.bf16.gmra.mxu0 %v1031
        %v1118 = vpop.f32.mrf.mxu0
        %v1119 = vadd.f32 %v934, %v1118
        %v1120 = vpop.f32.mrf.mxu0
        %v1121 = vpop.f32.mrf.mxu0
        %v1122 = vadd.f32 %v937, %v1121
        %v1123 = vpop.f32.mrf.mxu0
        %1124 = vmatprep.mubr.bf16.mxu0 0
        %1125 = vmatmul.mubr.bf16.gmra.mxu0 %v1034
        %v1126 = vpop.f32.mrf.mxu0
        %v1127 = vadd.f32 %v942, %v1126
        %v1128 = vpop.f32.mrf.mxu0
        %v1129 = vpop.f32.mrf.mxu0
        %v1130 = vadd.f32 %v945, %v1129
        %v1131 = vpop.f32.mrf.mxu0
        %1132 = vdwg.mxu0
        %v1133 = vld [vmem:[#allocation2] sm:$0xe]
        %v1134 = vld [vmem:[#allocation2 + $0xc] sm:$0xe]
        %v1135 = vld [vmem:[#allocation2 + $0x18] sm:$0xe]
        %v1136 = vld [vmem:[#allocation2 + $0x24] sm:$0xe]
        %v1137 = vld [vmem:[#allocation2 + $0x30] sm:$0xe]
        %v1138 = vld [vmem:[#allocation2 + $0x3c] sm:$0xe]
        %v1139 = vld [vmem:[#allocation2 + $0x48] sm:$0xe]
        %v1140 = vld [vmem:[#allocation2 + $0x54] sm:$0xe]
        %vm1157 = vcmask 1042432
        %vm1158 = vcmask 1046532
        %vm1159 = vmor %vm1157, %vm1158
        %v1160 = vrot.slane %v1133, 5
        %v1161 = vrot.slane %v1160, 4
        %v1162 = vrot.slane %v543, 5
        %v1163 = vsel %vm1159, %v1161, %v1162
        %v1164 = vrot.slane %v1162, 4
        %v1165 = vrot.slane %v566, 5
        %v1166 = vsel %vm1159, %v1164, %v1165
        %v1167 = vrot.slane %v1134, 5
        %v1168 = vrot.slane %v1167, 4
        %v1169 = vrot.slane %v545, 5
        %v1170 = vsel %vm1159, %v1168, %v1169
        %v1171 = vrot.slane %v1169, 4
        %v1172 = vrot.slane %v567, 5
        %v1173 = vsel %vm1159, %v1171, %v1172
        %v1174 = vrot.slane %v1135, 5
        %v1175 = vrot.slane %v1174, 4
        %v1176 = vrot.slane %v547, 5
        %v1177 = vsel %vm1159, %v1175, %v1176
        %v1178 = vrot.slane %v1176, 4
        %v1179 = vrot.slane %v568, 5
        %v1180 = vsel %vm1159, %v1178, %v1179
        %v1181 = vrot.slane %v1136, 5
        %v1182 = vrot.slane %v1181, 4
        %v1183 = vrot.slane %v549, 5
        %v1184 = vsel %vm1159, %v1182, %v1183
        %v1185 = vrot.slane %v1183, 4
        %v1186 = vrot.slane %v569, 5
        %v1187 = vsel %vm1159, %v1185, %v1186
        %v1188 = vrot.slane %v1137, 5
        %v1189 = vrot.slane %v1188, 4
        %v1190 = vrot.slane %v551, 5
        %v1191 = vsel %vm1159, %v1189, %v1190
        %v1192 = vrot.slane %v1190, 4
        %v1193 = vrot.slane %v570, 5
        %v1194 = vsel %vm1159, %v1192, %v1193
        %v1195 = vrot.slane %v1138, 5
        %v1196 = vrot.slane %v1195, 4
        %v1197 = vrot.slane %v553, 5
        %v1198 = vsel %vm1159, %v1196, %v1197
        %v1199 = vrot.slane %v1197, 4
        %v1200 = vrot.slane %v571, 5
        %v1201 = vsel %vm1159, %v1199, %v1200
        %v1202 = vrot.slane %v1139, 5
        %v1203 = vrot.slane %v1202, 4
        %v1204 = vrot.slane %v555, 5
        %v1205 = vsel %vm1159, %v1203, %v1204
        %v1206 = vrot.slane %v1204, 4
        %v1207 = vrot.slane %v572, 5
        %v1208 = vsel %vm1159, %v1206, %v1207
        %v1209 = vrot.slane %v1140, 5
        %v1210 = vrot.slane %v1209, 4
        %v1211 = vrot.slane %v557, 5
        %v1212 = vsel %vm1159, %v1210, %v1211
        %v1213 = vrot.slane %v1211, 4
        %v1214 = vrot.slane %v573, 5
        %v1215 = vsel %vm1159, %v1213, %v1214
        %s1216 = scalar_lea.vmem %s1, 64
        %v1217 = vld [vmem:[%s1216] sm:$0xf]
        %v1218 = vld [vmem:[%s1216 + $0x4] sm:$0xf]
        %v1219 = vld [vmem:[%s1216 + $0x8] sm:$0xf]
        %v1220 = vld [vmem:[%s1216 + $0xc] sm:$0xf]
        %v1221 = vld [vmem:[%s1216 + $0x10] sm:$0xf]
        %v1222 = vld [vmem:[%s1216 + $0x14] sm:$0xf]
        %v1223 = vld [vmem:[%s1216 + $0x18] sm:$0xf]
        %v1224 = vld [vmem:[%s1216 + $0x1c] sm:$0xf]
        %v1225 = vunpack.c.l.b16 %v1163
        %v1226 = vunpack.c.l.b16 %v1166
        %v1227 = vunpack.c.l.b16 %v1170
        %v1228 = vunpack.c.l.b16 %v1173
        %v1229 = vunpack.c.l.b16 %v1177
        %v1230 = vunpack.c.l.b16 %v1180
        %v1231 = vunpack.c.l.b16 %v1184
        %v1232 = vunpack.c.l.b16 %v1187
        %v1233 = vunpack.c.l.b16 %v1191
        %v1234 = vunpack.c.l.b16 %v1194
        %v1235 = vunpack.c.l.b16 %v1198
        %v1236 = vunpack.c.l.b16 %v1201
        %v1237 = vunpack.c.l.b16 %v1205
        %v1238 = vunpack.c.l.b16 %v1208
        %v1239 = vunpack.c.l.b16 %v1212
        %v1240 = vunpack.c.l.b16 %v1215
        %v1241 = vpack.c.b16 %v1226, %v1225
        %v1242 = vpack.c.b16 %v1228, %v1227
        %v1243 = vpack.c.b16 %v1230, %v1229
        %v1244 = vpack.c.b16 %v1232, %v1231
        %v1245 = vpack.c.b16 %v1234, %v1233
        %v1246 = vpack.c.b16 %v1236, %v1235
        %v1247 = vpack.c.b16 %v1238, %v1237
        %v1248 = vpack.c.b16 %v1240, %v1239
        %v1257 = vunpack.c.l.b16 %v1217
        %v1258 = vunpack.c.l.b16 %v1218
        %v1259 = vunpack.c.l.b16 %v1219
        %v1260 = vunpack.c.l.b16 %v1220
        %v1261 = vunpack.c.l.b16 %v1221
        %v1262 = vunpack.c.l.b16 %v1222
        %v1263 = vunpack.c.l.b16 %v1223
        %v1264 = vunpack.c.l.b16 %v1224
        %v1265 = vpack.c.b16 %v1258, %v1257
        %v1266 = vpack.c.b16 %v1260, %v1259
        %v1267 = vpack.c.b16 %v1262, %v1261
        %v1268 = vpack.c.b16 %v1264, %v1263
        %v1274 = vsel %vm826, %v1241, 0
        %v1277 = vsel %vm826, %v1242, 0
        %v1280 = vsel %vm826, %v1243, 0
        %v1283 = vsel %vm826, %v1244, 0
        %v1286 = vsel %vm826, %v1245, 0
        %v1289 = vsel %vm826, %v1246, 0
        %v1292 = vsel %vm826, %v1247, 0
        %v1295 = vsel %vm826, %v1248, 0
        %1297 = vmatprep.subr.bf16.mxu0 0
        %1298 = vmatpush1.bf16.msra.mxu0 0
        %1299 = vmatprep.subr.bf16.mxu0 0
        %1300 = vmatpush1.bf16.msra.mxu0 0
        %1301 = vmatprep.subr.bf16.mxu0 0
        %1302 = vmatpush1.bf16.msra.mxu0 0
        %1303 = vmatprep.subr.bf16.mxu0 0
        %1304 = vmatpush1.bf16.msra.mxu0 0
        %1305 = vmatprep.subr.bf16.mxu0 0
        %1306 = vmatpush1.bf16.msra.mxu0 %v1268
        %1307 = vmatprep.subr.bf16.mxu0 0
        %1308 = vmatpush1.bf16.msra.mxu0 %v1267
        %1309 = vmatprep.subr.bf16.mxu0 0
        %1310 = vmatpush1.bf16.msra.mxu0 %v1266
        %1311 = vmatprep.subr.bf16.mxu0 0
        %1312 = vmatpush1.bf16.msra.mxu0 %v1265
        %1313 = vmatprep.subr.bf16.mxu0 0
        %1314 = vmatpush2.bf16.msra.mxu0 0
        %1315 = vmatprep.subr.bf16.mxu0 0
        %1316 = vmatpush2.bf16.msra.mxu0 0
        %1317 = vmatprep.subr.bf16.mxu0 0
        %1318 = vmatpush2.bf16.msra.mxu0 0
        %1319 = vmatprep.subr.bf16.mxu0 0
        %1320 = vmatpush2.bf16.msra.mxu0 0
        %1321 = vmatprep.subr.bf16.mxu0 0
        %1322 = vmatpush2.bf16.msra.mxu0 0
        %1323 = vmatprep.subr.bf16.mxu0 0
        %1324 = vmatpush2.bf16.msra.mxu0 0
        %1325 = vmatprep.subr.bf16.mxu0 0
        %1326 = vmatpush2.bf16.msra.mxu0 0
        %1327 = vmatprep.subr.bf16.mxu0 0
        %1328 = vmatpush2.bf16.msra.mxu0 0
        %1329 = vmatprep.mubr.bf16.mxu0 0
        %1330 = vmatmul.mubr.bf16.gmra.mxu0 %v1274
        %v1331 = vpop.f32.mrf.mxu0
        %v1332 = vadd.f32 0.0, %v1331
        %v1333 = vpop.f32.mrf.mxu0
        %v1334 = vpop.f32.mrf.mxu0
        %v1335 = vadd.f32 0.0, %v1334
        %v1336 = vpop.f32.mrf.mxu0
        %1337 = vmatprep.mubr.bf16.mxu0 0
        %1338 = vmatmul.mubr.bf16.gmra.mxu0 %v1277
        %v1339 = vpop.f32.mrf.mxu0
        %v1340 = vadd.f32 0.0, %v1339
        %v1341 = vpop.f32.mrf.mxu0
        %v1342 = vpop.f32.mrf.mxu0
        %v1343 = vadd.f32 0.0, %v1342
        %v1344 = vpop.f32.mrf.mxu0
        %1345 = vmatprep.mubr.bf16.mxu0 0
        %1346 = vmatmul.mubr.bf16.gmra.mxu0 %v1280
        %v1347 = vpop.f32.mrf.mxu0
        %v1348 = vadd.f32 0.0, %v1347
        %v1349 = vpop.f32.mrf.mxu0
        %v1350 = vpop.f32.mrf.mxu0
        %v1351 = vadd.f32 0.0, %v1350
        %v1352 = vpop.f32.mrf.mxu0
        %1353 = vmatprep.mubr.bf16.mxu0 0
        %1354 = vmatmul.mubr.bf16.gmra.mxu0 %v1283
        %v1355 = vpop.f32.mrf.mxu0
        %v1356 = vadd.f32 0.0, %v1355
        %v1357 = vpop.f32.mrf.mxu0
        %v1358 = vpop.f32.mrf.mxu0
        %v1359 = vadd.f32 0.0, %v1358
        %v1360 = vpop.f32.mrf.mxu0
        %1361 = vmatprep.mubr.bf16.mxu0 0
        %1362 = vmatmul.mubr.bf16.gmra.mxu0 %v1286
        %v1363 = vpop.f32.mrf.mxu0
        %v1364 = vadd.f32 0.0, %v1363
        %v1365 = vpop.f32.mrf.mxu0
        %v1366 = vpop.f32.mrf.mxu0
        %v1367 = vadd.f32 0.0, %v1366
        %v1368 = vpop.f32.mrf.mxu0
        %1369 = vmatprep.mubr.bf16.mxu0 0
        %1370 = vmatmul.mubr.bf16.gmra.mxu0 %v1289
        %v1371 = vpop.f32.mrf.mxu0
        %v1372 = vadd.f32 0.0, %v1371
        %v1373 = vpop.f32.mrf.mxu0
        %v1374 = vpop.f32.mrf.mxu0
        %v1375 = vadd.f32 0.0, %v1374
        %v1376 = vpop.f32.mrf.mxu0
        %1377 = vmatprep.mubr.bf16.mxu0 0
        %1378 = vmatmul.mubr.bf16.gmra.mxu0 %v1292
        %v1379 = vpop.f32.mrf.mxu0
        %v1380 = vadd.f32 0.0, %v1379
        %v1381 = vpop.f32.mrf.mxu0
        %v1382 = vpop.f32.mrf.mxu0
        %v1383 = vadd.f32 0.0, %v1382
        %v1384 = vpop.f32.mrf.mxu0
        %1385 = vmatprep.mubr.bf16.mxu0 0
        %1386 = vmatmul.mubr.bf16.gmra.mxu0 %v1295
        %v1387 = vpop.f32.mrf.mxu0
        %v1388 = vadd.f32 0.0, %v1387
        %v1389 = vpop.f32.mrf.mxu0
        %v1390 = vpop.f32.mrf.mxu0
        %v1391 = vadd.f32 0.0, %v1390
        %v1392 = vpop.f32.mrf.mxu0
        %1393 = vdwg.mxu0
        %v1394 = vadd.f32 %v1071, %v1332
        %v1395 = vadd.f32 %v1074, %v1335
        %v1396 = vadd.f32 %v1079, %v1340
        %v1397 = vadd.f32 %v1082, %v1343
        %v1398 = vadd.f32 %v1087, %v1348
        %v1399 = vadd.f32 %v1090, %v1351
        %v1400 = vadd.f32 %v1095, %v1356
        %v1401 = vadd.f32 %v1098, %v1359
        %v1402 = vadd.f32 %v1103, %v1364
        %v1403 = vadd.f32 %v1106, %v1367
        %v1404 = vadd.f32 %v1111, %v1372
        %v1405 = vadd.f32 %v1114, %v1375
        %v1406 = vadd.f32 %v1119, %v1380
        %v1407 = vadd.f32 %v1122, %v1383
        %v1408 = vadd.f32 %v1127, %v1388
        %v1409 = vadd.f32 %v1130, %v1391
        %v1410 = vld [vmem:[%s2] sm:$0x1]
        %v1412 = vlaneseq
        %v1413 = vshrl.u32 %v1412, 7
        %v1414 = vsub.s32 0, %v1413
        %v1415 = vrot.slane %v1410, %v1414
        %v1417 = vadd.f32 %v1394, %v1415
        %v1418 = vadd.f32 %v1395, %v1415
        %v1419 = vadd.f32 %v1396, %v1415
        %v1420 = vadd.f32 %v1397, %v1415
        %v1421 = vadd.f32 %v1398, %v1415
        %v1422 = vadd.f32 %v1399, %v1415
        %v1423 = vadd.f32 %v1400, %v1415
        %v1424 = vadd.f32 %v1401, %v1415
        %v1425 = vadd.f32 %v1402, %v1415
        %v1426 = vadd.f32 %v1403, %v1415
        %v1427 = vadd.f32 %v1404, %v1415
        %v1428 = vadd.f32 %v1405, %v1415
        %v1429 = vadd.f32 %v1406, %v1415
        %v1430 = vadd.f32 %v1407, %v1415
        %v1431 = vadd.f32 %v1408, %v1415
        %v1432 = vadd.f32 %v1409, %v1415
        %v1433 = vmax.f32 %v1417, 0.0
        %v1434 = vmax.f32 %v1418, 0.0
        %v1435 = vmax.f32 %v1419, 0.0
        %v1436 = vmax.f32 %v1420, 0.0
        %v1437 = vmax.f32 %v1421, 0.0
        %v1438 = vmax.f32 %v1422, 0.0
        %v1439 = vmax.f32 %v1423, 0.0
        %v1440 = vmax.f32 %v1424, 0.0
        %v1441 = vmax.f32 %v1425, 0.0
        %v1442 = vmax.f32 %v1426, 0.0
        %v1443 = vmax.f32 %v1427, 0.0
        %v1444 = vmax.f32 %v1428, 0.0
        %v1445 = vmax.f32 %v1429, 0.0
        %v1446 = vmax.f32 %v1430, 0.0
        %v1447 = vmax.f32 %v1431, 0.0
        %v1448 = vmax.f32 %v1432, 0.0
        %v1449 = vpack.c.bf16 %v1434, %v1433
        %v1450 = vpack.c.bf16 %v1436, %v1435
        %v1451 = vpack.c.bf16 %v1438, %v1437
        %v1452 = vpack.c.bf16 %v1440, %v1439
        %v1453 = vpack.c.bf16 %v1442, %v1441
        %v1454 = vpack.c.bf16 %v1444, %v1443
        %v1455 = vpack.c.bf16 %v1446, %v1445
        %v1456 = vpack.c.bf16 %v1448, %v1447
        %v1457 = vld [vmem:[%s3] sm:$0xf]
        %v1458 = vld [vmem:[%s3 + $0x4] sm:$0xf]
        %v1459 = vld [vmem:[%s3 + $0x8] sm:$0xf]
        %v1460 = vld [vmem:[%s3 + $0xc] sm:$0xf]
        %v1461 = vld [vmem:[%s3 + $0x10] sm:$0xf]
        %v1462 = vld [vmem:[%s3 + $0x14] sm:$0xf]
        %v1463 = vld [vmem:[%s3 + $0x18] sm:$0xf]
        %v1464 = vld [vmem:[%s3 + $0x1c] sm:$0xf]
        %v1465 = vld [vmem:[%s3 + $0x20] sm:$0xf]
        %v1466 = vld [vmem:[%s3 + $0x24] sm:$0xf]
        %v1467 = vld [vmem:[%s3 + $0x28] sm:$0xf]
        %v1468 = vld [vmem:[%s3 + $0x2c] sm:$0xf]
        %v1469 = vld [vmem:[%s3 + $0x30] sm:$0xf]
        %v1470 = vld [vmem:[%s3 + $0x34] sm:$0xf]
        %v1471 = vld [vmem:[%s3 + $0x38] sm:$0xf]
        %v1472 = vld [vmem:[%s3 + $0x3c] sm:$0xf]
        %v1489 = vunpack.c.l.b16 %v1457
        %v1490 = vunpack.c.l.b16 %v1458
        %v1491 = vunpack.c.l.b16 %v1459
        %v1492 = vunpack.c.l.b16 %v1460
        %v1493 = vunpack.c.l.b16 %v1461
        %v1494 = vunpack.c.l.b16 %v1462
        %v1495 = vunpack.c.l.b16 %v1463
        %v1496 = vunpack.c.l.b16 %v1464
        %v1497 = vunpack.c.l.b16 %v1465
        %v1498 = vunpack.c.l.b16 %v1466
        %v1499 = vunpack.c.l.b16 %v1467
        %v1500 = vunpack.c.l.b16 %v1468
        %v1501 = vunpack.c.l.b16 %v1469
        %v1502 = vunpack.c.l.b16 %v1470
        %v1503 = vunpack.c.l.b16 %v1471
        %v1504 = vunpack.c.l.b16 %v1472
        %v1505 = vpack.c.b16 %v1490, %v1489
        %v1506 = vpack.c.b16 %v1492, %v1491
        %v1507 = vpack.c.b16 %v1494, %v1493
        %v1508 = vpack.c.b16 %v1496, %v1495
        %v1509 = vpack.c.b16 %v1498, %v1497
        %v1510 = vpack.c.b16 %v1500, %v1499
        %v1511 = vpack.c.b16 %v1502, %v1501
        %v1512 = vpack.c.b16 %v1504, %v1503
        %1521 = vmatprep.subr.bf16.mxu0 0
        %1522 = vmatpush1.bf16.msra.mxu0 %v1512
        %1523 = vmatprep.subr.bf16.mxu0 0
        %1524 = vmatpush1.bf16.msra.mxu0 %v1511
        %1525 = vmatprep.subr.bf16.mxu0 0
        %1526 = vmatpush1.bf16.msra.mxu0 %v1510
        %1527 = vmatprep.subr.bf16.mxu0 0
        %1528 = vmatpush1.bf16.msra.mxu0 %v1509
        %1529 = vmatprep.subr.bf16.mxu0 0
        %1530 = vmatpush1.bf16.msra.mxu0 %v1508
        %1531 = vmatprep.subr.bf16.mxu0 0
        %1532 = vmatpush1.bf16.msra.mxu0 %v1507
        %1533 = vmatprep.subr.bf16.mxu0 0
        %1534 = vmatpush1.bf16.msra.mxu0 %v1506
        %1535 = vmatprep.subr.bf16.mxu0 0
        %1536 = vmatpush1.bf16.msra.mxu0 %v1505
        %1537 = vmatprep.subr.bf16.mxu0 0
        %1538 = vmatpush2.bf16.msra.mxu0 0
        %1539 = vmatprep.subr.bf16.mxu0 0
        %1540 = vmatpush2.bf16.msra.mxu0 0
        %1541 = vmatprep.subr.bf16.mxu0 0
        %1542 = vmatpush2.bf16.msra.mxu0 0
        %1543 = vmatprep.subr.bf16.mxu0 0
        %1544 = vmatpush2.bf16.msra.mxu0 0
        %1545 = vmatprep.subr.bf16.mxu0 0
        %1546 = vmatpush2.bf16.msra.mxu0 0
        %1547 = vmatprep.subr.bf16.mxu0 0
        %1548 = vmatpush2.bf16.msra.mxu0 0
        %1549 = vmatprep.subr.bf16.mxu0 0
        %1550 = vmatpush2.bf16.msra.mxu0 0
        %1551 = vmatprep.subr.bf16.mxu0 0
        %1552 = vmatpush2.bf16.msra.mxu0 0
        %1553 = vmatprep.mubr.bf16.mxu0 0
        %1554 = vmatmul.mubr.bf16.gmra.mxu0 %v1449
        %v1555 = vpop.f32.mrf.mxu0
        %v1556 = vadd.f32 0.0, %v1555
        %v1557 = vpop.f32.mrf.mxu0
        %v1558 = vpop.f32.mrf.mxu0
        %v1559 = vadd.f32 0.0, %v1558
        %v1560 = vpop.f32.mrf.mxu0
        %1561 = vmatprep.mubr.bf16.mxu0 0
        %1562 = vmatmul.mubr.bf16.gmra.mxu0 %v1450
        %v1563 = vpop.f32.mrf.mxu0
        %v1564 = vadd.f32 0.0, %v1563
        %v1565 = vpop.f32.mrf.mxu0
        %v1566 = vpop.f32.mrf.mxu0
        %v1567 = vadd.f32 0.0, %v1566
        %v1568 = vpop.f32.mrf.mxu0
        %1569 = vmatprep.mubr.bf16.mxu0 0
        %1570 = vmatmul.mubr.bf16.gmra.mxu0 %v1451
        %v1571 = vpop.f32.mrf.mxu0
        %v1572 = vadd.f32 0.0, %v1571
        %v1573 = vpop.f32.mrf.mxu0
        %v1574 = vpop.f32.mrf.mxu0
        %v1575 = vadd.f32 0.0, %v1574
        %v1576 = vpop.f32.mrf.mxu0
        %1577 = vmatprep.mubr.bf16.mxu0 0
        %1578 = vmatmul.mubr.bf16.gmra.mxu0 %v1452
        %v1579 = vpop.f32.mrf.mxu0
        %v1580 = vadd.f32 0.0, %v1579
        %v1581 = vpop.f32.mrf.mxu0
        %v1582 = vpop.f32.mrf.mxu0
        %v1583 = vadd.f32 0.0, %v1582
        %v1584 = vpop.f32.mrf.mxu0
        %1585 = vmatprep.mubr.bf16.mxu0 0
        %1586 = vmatmul.mubr.bf16.gmra.mxu0 %v1453
        %v1587 = vpop.f32.mrf.mxu0
        %v1588 = vadd.f32 0.0, %v1587
        %v1589 = vpop.f32.mrf.mxu0
        %v1590 = vpop.f32.mrf.mxu0
        %v1591 = vadd.f32 0.0, %v1590
        %v1592 = vpop.f32.mrf.mxu0
        %1593 = vmatprep.mubr.bf16.mxu0 0
        %1594 = vmatmul.mubr.bf16.gmra.mxu0 %v1454
        %v1595 = vpop.f32.mrf.mxu0
        %v1596 = vadd.f32 0.0, %v1595
        %v1597 = vpop.f32.mrf.mxu0
        %v1598 = vpop.f32.mrf.mxu0
        %v1599 = vadd.f32 0.0, %v1598
        %v1600 = vpop.f32.mrf.mxu0
        %1601 = vmatprep.mubr.bf16.mxu0 0
        %1602 = vmatmul.mubr.bf16.gmra.mxu0 %v1455
        %v1603 = vpop.f32.mrf.mxu0
        %v1604 = vadd.f32 0.0, %v1603
        %v1605 = vpop.f32.mrf.mxu0
        %v1606 = vpop.f32.mrf.mxu0
        %v1607 = vadd.f32 0.0, %v1606
        %v1608 = vpop.f32.mrf.mxu0
        %1609 = vmatprep.mubr.bf16.mxu0 0
        %1610 = vmatmul.mubr.bf16.gmra.mxu0 %v1456
        %v1611 = vpop.f32.mrf.mxu0
        %v1612 = vadd.f32 0.0, %v1611
        %v1613 = vpop.f32.mrf.mxu0
        %v1614 = vpop.f32.mrf.mxu0
        %v1615 = vadd.f32 0.0, %v1614
        %v1616 = vpop.f32.mrf.mxu0
        %1617 = vdwg.mxu0
        %v1618 = vadd.f32 %v1556, %v1559
        %v1619 = vrot.slane %v1618, 4
        %v1620 = vadd.f32 %v1618, %v1619
        %v1621 = vrot.slane %v1620, 2
        %v1622 = vadd.f32 %v1620, %v1621
        %v1623 = vrot.slane %v1622, 1
        %v1624 = vadd.f32 %v1622, %v1623
        %v1625 = vadd.f32 %v1564, %v1567
        %v1626 = vrot.slane %v1625, 4
        %v1627 = vadd.f32 %v1625, %v1626
        %v1628 = vrot.slane %v1627, 2
        %v1629 = vadd.f32 %v1627, %v1628
        %v1630 = vrot.slane %v1629, 1
        %v1631 = vadd.f32 %v1629, %v1630
        %v1632 = vadd.f32 %v1572, %v1575
        %v1633 = vrot.slane %v1632, 4
        %v1634 = vadd.f32 %v1632, %v1633
        %v1635 = vrot.slane %v1634, 2
        %v1636 = vadd.f32 %v1634, %v1635
        %v1637 = vrot.slane %v1636, 1
        %v1638 = vadd.f32 %v1636, %v1637
        %v1639 = vadd.f32 %v1580, %v1583
        %v1640 = vrot.slane %v1639, 4
        %v1641 = vadd.f32 %v1639, %v1640
        %v1642 = vrot.slane %v1641, 2
        %v1643 = vadd.f32 %v1641, %v1642
        %v1644 = vrot.slane %v1643, 1
        %v1645 = vadd.f32 %v1643, %v1644
        %v1646 = vadd.f32 %v1588, %v1591
        %v1647 = vrot.slane %v1646, 4
        %v1648 = vadd.f32 %v1646, %v1647
        %v1649 = vrot.slane %v1648, 2
        %v1650 = vadd.f32 %v1648, %v1649
        %v1651 = vrot.slane %v1650, 1
        %v1652 = vadd.f32 %v1650, %v1651
        %v1653 = vadd.f32 %v1596, %v1599
        %v1654 = vrot.slane %v1653, 4
        %v1655 = vadd.f32 %v1653, %v1654
        %v1656 = vrot.slane %v1655, 2
        %v1657 = vadd.f32 %v1655, %v1656
        %v1658 = vrot.slane %v1657, 1
        %v1659 = vadd.f32 %v1657, %v1658
        %v1660 = vadd.f32 %v1604, %v1607
        %v1661 = vrot.slane %v1660, 4
        %v1662 = vadd.f32 %v1660, %v1661
        %v1663 = vrot.slane %v1662, 2
        %v1664 = vadd.f32 %v1662, %v1663
        %v1665 = vrot.slane %v1664, 1
        %v1666 = vadd.f32 %v1664, %v1665
        %v1667 = vadd.f32 %v1612, %v1615
        %v1668 = vrot.slane %v1667, 4
        %v1669 = vadd.f32 %v1667, %v1668
        %v1670 = vrot.slane %v1669, 2
        %v1671 = vadd.f32 %v1669, %v1670
        %v1672 = vrot.slane %v1671, 1
        %v1673 = vadd.f32 %v1671, %v1672
        %v1674 = vrcp.pop 16.0
        %v1675 = vmul.f32 %v1624, %v1674
        %v1676 = vmul.f32 %v1631, %v1674
        %v1677 = vmul.f32 %v1638, %v1674
        %v1678 = vmul.f32 %v1645, %v1674
        %v1679 = vmul.f32 %v1652, %v1674
        %v1680 = vmul.f32 %v1659, %v1674
        %v1681 = vmul.f32 %v1666, %v1674
        %v1682 = vmul.f32 %v1673, %v1674
        %v1683 = vld [vmem:[%s4] sm:$0x1]
        %v1685 = vlaneseq
        %v1686 = vshrl.u32 %v1685, 7
        %v1687 = vsub.s32 0, %v1686
        %v1688 = vrot.slane %v1683, %v1687
        %v1690 = vadd.f32 %v1675, %v1688
        %v1691 = vadd.f32 %v1676, %v1688
        %v1692 = vadd.f32 %v1677, %v1688
        %v1693 = vadd.f32 %v1678, %v1688
        %v1694 = vadd.f32 %v1679, %v1688
        %v1695 = vadd.f32 %v1680, %v1688
        %v1696 = vadd.f32 %v1681, %v1688
        %v1697 = vadd.f32 %v1682, %v1688
        %s1698 = smul.u32 %s19, 8
        %v1707 = vrot.slane %v1691, 7
        %vm1708 = vcmask 1041409
        %v1709 = vsel %vm1708, %v1707, %v1690
        %v1710 = vrot.slane %v1692, 6
        %vm1711 = vcmask 1042434
        %v1712 = vsel %vm1711, %v1710, %v1709
        %v1713 = vrot.slane %v1693, 5
        %vm1714 = vcmask 1043459
        %v1715 = vsel %vm1714, %v1713, %v1712
        %v1716 = vrot.slane %v1694, 4
        %vm1717 = vcmask 1044484
        %v1718 = vsel %vm1717, %v1716, %v1715
        %v1719 = vrot.slane %v1695, 3
        %vm1720 = vcmask 1045509
        %v1721 = vsel %vm1720, %v1719, %v1718
        %v1722 = vrot.slane %v1696, 2
        %vm1723 = vcmask 1046534
        %v1724 = vsel %vm1723, %v1722, %v1721
        %v1725 = vrot.slane %v1697, 1
        %vm1726 = vcmask 1047559
        %v1727 = vsel %vm1726, %v1725, %v1724
        %s1729 = scalar_lea.vmem [#allocation3], %s1698
        %1730 = vst [vmem:[%s1729] sm:$0xff] %v1727
        %p1731 = scmp.eq.s32.totalorder %s19, 1
        // Predicated region
        $region53: #{deepfake_detector_forward.1} parent=47 // pred_check
          %p1732 = pneg %p1731
        $region54: #{deepfake_detector_forward.1} parent=47 // pred_check_branch
          %1734 = sbr.rel (%p1732) target = $region56
        $region55: #{deepfake_detector_forward.1} parent=47 // pred_region
          %v1735 = vld [vmem:[#allocation3] sm:$0xff]
          %v1736 = vld [vmem:[#allocation3 + $0x8] sm:$0xff]
          %v1737 = vrot.slane %v1735, 4
          %v1738 = vadd.f32 %v1735, %v1737
          %v1739 = vrot.slane %v1738, 2
          %v1740 = vadd.f32 %v1738, %v1739
          %v1741 = vrot.slane %v1740, 1
          %v1742 = vadd.f32 %v1740, %v1741
          %v1743 = vrot.slane %v1736, 4
          %v1744 = vadd.f32 %v1736, %v1743
          %v1745 = vrot.slane %v1744, 2
          %v1746 = vadd.f32 %v1744, %v1745
          %v1747 = vrot.slane %v1746, 1
          %v1748 = vadd.f32 %v1746, %v1747
          %v1749 = vrcp.pop 8.0
          %v1750 = vmul.f32 %v1742, %v1749
          %v1751 = vmul.f32 %v1748, %v1749
          %v1752 = vld [vmem:[%s5] sm:$0xff]
          %v1753 = vld [vmem:[%s5 + $0x8] sm:$0xff]
          %v1754 = vld [vmem:[%s5 + $0x10] sm:$0xff]
          %v1755 = vld [vmem:[%s5 + $0x18] sm:$0xff]
          %v1756 = vld [vmem:[%s5 + $0x20] sm:$0xff]
          %v1757 = vld [vmem:[%s5 + $0x28] sm:$0xff]
          %v1758 = vld [vmem:[%s5 + $0x30] sm:$0xff]
          %v1759 = vld [vmem:[%s5 + $0x38] sm:$0xff]
          %v1760 = vld [vmem:[%s5 + $0x40] sm:$0xff]
          %v1761 = vld [vmem:[%s5 + $0x48] sm:$0xff]
          %v1762 = vld [vmem:[%s5 + $0x50] sm:$0xff]
          %v1763 = vld [vmem:[%s5 + $0x58] sm:$0xff]
          %v1764 = vld [vmem:[%s5 + $0x60] sm:$0xff]
          %v1765 = vld [vmem:[%s5 + $0x68] sm:$0xff]
          %v1766 = vld [vmem:[%s5 + $0x70] sm:$0xff]
          %v1767 = vld [vmem:[%s5 + $0x78] sm:$0xff]
          %v1768 = vld [vmem:[%s6] sm:$0x1]
          %v1770 = vlaneseq
          %v1771 = vshrl.u32 %v1770, 7
          %v1772 = vsub.s32 0, %v1771
          %v1773 = vrot.slane %v1768, %v1772
          %v1777 = vsel %vm1708, %v1751, %v1750
          %1779 = vmatprep.subr.mxu0 0.0
          %1780 = vmatpush1.msra.mxu0 %v1767
          %1781 = vmatprep.subr.mxu0 0.0
          %1782 = vmatpush1.msra.mxu0 %v1766
          %1783 = vmatprep.subr.mxu0 0.0
          %1784 = vmatpush1.msra.mxu0 %v1765
          %1785 = vmatprep.subr.mxu0 0.0
          %1786 = vmatpush1.msra.mxu0 %v1764
          %1787 = vmatprep.subr.mxu0 0.0
          %1788 = vmatpush1.msra.mxu0 %v1763
          %1789 = vmatprep.subr.mxu0 0.0
          %1790 = vmatpush1.msra.mxu0 %v1762
          %1791 = vmatprep.subr.mxu0 0.0
          %1792 = vmatpush1.msra.mxu0 %v1761
          %1793 = vmatprep.subr.mxu0 0.0
          %1794 = vmatpush1.msra.mxu0 %v1760
          %1795 = vmatprep.subr.mxu0 0.0
          %1796 = vmatpush1.msra.mxu0 %v1759
          %1797 = vmatprep.subr.mxu0 0.0
          %1798 = vmatpush1.msra.mxu0 %v1758
          %1799 = vmatprep.subr.mxu0 0.0
          %1800 = vmatpush1.msra.mxu0 %v1757
          %1801 = vmatprep.subr.mxu0 0.0
          %1802 = vmatpush1.msra.mxu0 %v1756
          %1803 = vmatprep.subr.mxu0 0.0
          %1804 = vmatpush1.msra.mxu0 %v1755
          %1805 = vmatprep.subr.mxu0 0.0
          %1806 = vmatpush1.msra.mxu0 %v1754
          %1807 = vmatprep.subr.mxu0 0.0
          %1808 = vmatpush1.msra.mxu0 %v1753
          %1809 = vmatprep.subr.mxu0 0.0
          %1810 = vmatpush1.msra.mxu0 %v1752
          %1811 = vmatprep.subr.mxu0 0.0
          %1812 = vmatpush2.msra.mxu0 0.0
          %1813 = vmatprep.subr.mxu0 0.0
          %1814 = vmatpush2.msra.mxu0 0.0
          %1815 = vmatprep.subr.mxu0 0.0
          %1816 = vmatpush2.msra.mxu0 0.0
          %1817 = vmatprep.subr.mxu0 0.0
          %1818 = vmatpush2.msra.mxu0 0.0
          %1819 = vmatprep.subr.mxu0 0.0
          %1820 = vmatpush2.msra.mxu0 0.0
          %1821 = vmatprep.subr.mxu0 0.0
          %1822 = vmatpush2.msra.mxu0 0.0
          %1823 = vmatprep.subr.mxu0 0.0
          %1824 = vmatpush2.msra.mxu0 0.0
          %1825 = vmatprep.subr.mxu0 0.0
          %1826 = vmatpush2.msra.mxu0 0.0
          %1827 = vmatprep.subr.mxu0 0.0
          %1828 = vmatpush2.msra.mxu0 0.0
          %1829 = vmatprep.subr.mxu0 0.0
          %1830 = vmatpush2.msra.mxu0 0.0
          %1831 = vmatprep.subr.mxu0 0.0
          %1832 = vmatpush2.msra.mxu0 0.0
          %1833 = vmatprep.subr.mxu0 0.0
          %1834 = vmatpush2.msra.mxu0 0.0
          %1835 = vmatprep.subr.mxu0 0.0
          %1836 = vmatpush2.msra.mxu0 0.0
          %1837 = vmatprep.subr.mxu0 0.0
          %1838 = vmatpush2.msra.mxu0 0.0
          %1839 = vmatprep.subr.mxu0 0.0
          %1840 = vmatpush2.msra.mxu0 0.0
          %1841 = vmatprep.subr.mxu0 0.0
          %1842 = vmatpush2.msra.mxu0 0.0
          %1843 = vmatprep.mubr.f32.mxu0 0.0
          %1844 = vmatmul.mubr.f32.gmra.mxu0 %v1777
          %v1845 = vpop.f32.mrf.mxu0
          %v1846 = vadd.f32 %v1773, %v1845
          %v1847 = vpop.f32.mrf.mxu0
          %1848 = vdwg.mxu0
          %vm1849 = vcmask 9216
          %v1850 = vsel %vm1849, %v1846, -inf
          %1851 = vmax.xlane.f32.xlu0 %v1850
          %v1852 = vpop.xlane.xlu0 %1851
          %v1853 = vsub.f32 %v1846, %v1852
          %v1854 = vmul.f32 %v1853, 1.442695
          %v1855 = vpow.pop %v1854
          %v1856 = vsel %vm1849, %v1855, 0.0
          %1857 = vadd.xlane.f32.xlu0 %v1856
          %v1858 = vpop.xlane.xlu0 %1857
          %v1859 = vrcp.pop %v1858
          %v1860 = vmul.f32 %v1855, %v1859
          %1861 = vst.msk [vmem:[#allocation4] sm:$0x3] %vm1849, %v1860
        $region56: #{deepfake_detector_forward.1} parent=47 // pred_fallthru
          _
        // Predicated region
        $region57: #{deepfake_detector_forward.1} parent=47 // pred_check
          %p1862 = pneg %p184
        $region58: #{deepfake_detector_forward.1} parent=47 // pred_check_branch
          %1864 = sbr.rel (%p1862) target = $region60
        $region59: #{deepfake_detector_forward.1} parent=47 // pred_region
          %s1866 = ssub.s32 32, 32
          %1867 = vsyncadd [#allocation5], %s1866
          %s1869 = sshll.u32 [#allocation4], 4
          %s1870 = int_to_ptr.vmem [resolvable:$true] %s1869
          %1872 = dma.vmem_to_hbm [thread:$0]  %s1870, 32, %s7, [#allocation5]
        $region60: #{deepfake_detector_forward.1} parent=47 // pred_fallthru
          _
        // Predicated region
        $region61: #{deepfake_detector_forward.1} parent=47 // pred_check
          %p1873 = pneg %p184
        $region62: #{deepfake_detector_forward.1} parent=47 // pred_check_branch
          %1875 = sbr.rel (%p1873) target = $region64
        $region63: #{deepfake_detector_forward.1} parent=47 // pred_region
          %1876 = dma.done [#allocation5], 32
        $region64: #{deepfake_detector_forward.1} parent=47 // pred_fallthru
          _
      $region48: #{deepfake_detector_forward.1} parent=5 // pred_fallthru
        _
      %p1877 = scmp.le.s32.totalorder 2, %s14
      // Predicated region
      $region65: #{deepfake_detector_forward.1} parent=5 // pred_check
        %p1878 = pneg %p1877
      $region66: #{deepfake_detector_forward.1} parent=5 // pred_check_branch
        %1880 = sbr.rel (%p1878) target = $region68
      $region67: #{deepfake_detector_forward.1} parent=5 // pred_region
        %s1881 = ssub.s32 %s14, 2
      $region68: #{deepfake_detector_forward.1} parent=5 // pred_fallthru
        _
    $region6: #{deepfake_detector_forward.1} parent=1 // loop_footer
      %s18 = sadd.s32 1, %s14
    $region7: #{deepfake_detector_forward.1} parent=1 // loop_footer_branch
      %13 = sbr.rel target = $region3
    $region8: #{deepfake_detector_forward.1} parent=1 // loop_exit
      _
    %1882 = vsyncpa [#allocation5], 1
    %s1883 = scalar_lea.sflag [#allocation5], 1
    %1884 = vsyncpa %s1883, 1

</llo_original>
